<compile_context>
chip_gen: v7x
topology: tpu7x:2x2x1
jax: 0.10.0
libtpu: 0.0.40
codegen_flags: <defaults>
</compile_context>

<pallas_src>
import functools

import jax
import jax.numpy as jnp
from jax.experimental import pallas as pl
from jax.experimental.pallas import tpu as pltpu

LANE = 128                       # lane-dense output channel padding
VMEM_LIMIT = 32 * 1024 * 1024    # explicit scoped-VMEM budget (safe on v5e/v6e/v7x)


def _round_up(x, m):
    return (x + m - 1) // m * m


def _pick_hw_tile(hw, cap=512):
    """Largest multiple-of-8 divisor of hw that is <= cap."""
    for t in range(min(cap, hw), 7, -1):
        if hw % t == 0 and t % 8 == 0:
            return t
    raise ValueError(f"HW={hw} has no multiple-of-8 tile")


# -----------------------------------------------------------------------------
# Kernel 1: conv-as-GEMM (full K per step) + folded-BN bias + ReLU
# -----------------------------------------------------------------------------
def _conv_bn_relu_kernel(p_ref, w_ref, b_ref, o_ref):
    """Grid = (M/tm, N/tn); the whole K (= kh*kw*Cin) is loaded per step.

    p_ref: [tm, K]  im2col patch tile      (bf16)
    w_ref: [K,  tn] BN-folded weight tile  (bf16)
    b_ref: [1,  tn] folded BN bias         (f32)
    o_ref: [tm, tn] output activation tile (bf16, lane-dense)
    """
    y = jnp.dot(p_ref[...], w_ref[...], preferred_element_type=jnp.float32)
    o_ref[...] = jnp.maximum(y + b_ref[...], 0.0).astype(o_ref.dtype)


def fused_conv_bn_relu_gemm(p2d, w2d, bias, *, tm, tn, out_dtype=jnp.bfloat16):
    M, K = p2d.shape
    Kw, N = w2d.shape
    assert K == Kw and M % tm == 0 and N % tn == 0
    grid = (M // tm, N // tn)
    return pl.pallas_call(
        _conv_bn_relu_kernel,
        out_shape=jax.ShapeDtypeStruct((M, N), out_dtype),
        grid=grid,
        in_specs=[
            pl.BlockSpec((tm, K), lambda i, j: (i, 0)),
            pl.BlockSpec((K, tn), lambda i, j: (0, j)),
            pl.BlockSpec((1, tn), lambda i, j: (0, j)),
        ],
        out_specs=pl.BlockSpec((tm, tn), lambda i, j: (i, j)),
        compiler_params=pltpu.CompilerParams(
            dimension_semantics=("parallel", "parallel"),
            vmem_limit_bytes=VMEM_LIMIT,
        ),
    )(p2d, w2d, bias)


# -----------------------------------------------------------------------------
# Kernel 2: last conv GEMM (full K) + bias + ReLU + global-average-pool, fused.
# Per-batch output block => batch axis is "parallel" (both cores on v7x), and
# the [B, Ho, Wo, Cout] activation never touches HBM.
# -----------------------------------------------------------------------------
def _conv_bn_relu_gap_kernel(p_ref, w_ref, b_ref, gap_ref, *, inv_hw):
    """Grid = (B, N/tn, HW/t_hw); hw is the innermost ("arbitrary") reduction.

    p_ref:   [1, t_hw, K] im2col patch tile for batch b  (bf16)
    w_ref:   [K, tn]      BN-folded weight tile          (bf16)
    b_ref:   [1, tn]      folded BN bias                 (f32)
    gap_ref: [1, 1, tn]   pooled features for batch b    (f32, resident across hw)
    """
    hw_i = pl.program_id(2)

    @pl.when(hw_i == 0)
    def _init():
        gap_ref[...] = jnp.zeros_like(gap_ref)

    y = jnp.dot(p_ref[0], w_ref[...], preferred_element_type=jnp.float32)
    y = jnp.maximum(y + b_ref[...], 0.0)                         # (t_hw, tn)
    part = jnp.sum(y, axis=0, keepdims=True) * inv_hw            # (1, tn)
    gap_ref[...] += part.reshape(gap_ref.shape)


def fused_conv_bn_relu_gap(p3d, w2d, bias, *, t_hw, tn):
    B, HW, K = p3d.shape
    Kw, N = w2d.shape
    assert K == Kw and HW % t_hw == 0 and N % tn == 0
    grid = (B, N // tn, HW // t_hw)
    kernel = functools.partial(_conv_bn_relu_gap_kernel, inv_hw=1.0 / HW)
    return pl.pallas_call(
        kernel,
        out_shape=jax.ShapeDtypeStruct((B, 1, N), jnp.float32),
        grid=grid,
        in_specs=[
            pl.BlockSpec((1, t_hw, K), lambda b, n, hw: (b, hw, 0)),
            pl.BlockSpec((K, tn), lambda b, n, hw: (0, n)),
            pl.BlockSpec((1, tn), lambda b, n, hw: (0, n)),
        ],
        out_specs=pl.BlockSpec((1, 1, tn), lambda b, n, hw: (b, 0, n)),
        compiler_params=pltpu.CompilerParams(
            dimension_semantics=("parallel", "parallel", "arbitrary"),
            vmem_limit_bytes=VMEM_LIMIT,
        ),
    )(p3d, w2d, bias)


# -----------------------------------------------------------------------------
# Glue: im2col, BN fold + padding, parameter init
# -----------------------------------------------------------------------------
def _im2col(x_nhwc, k, stride, pad, c_take=None):
    """x: [B, H, W, C] -> patches [B, Ho, Wo, k*k*c_take] ((di,dj) outer, c inner)."""
    B, H, W, C = x_nhwc.shape
    if c_take is None:
        c_take = C
    xp = jnp.pad(x_nhwc[..., :c_take], ((0, 0), (pad, pad), (pad, pad), (0, 0)))
    Ho = (H + 2 * pad - k) // stride + 1
    Wo = (W + 2 * pad - k) // stride + 1
    cols = []
    for di in range(k):
        for dj in range(k):
            cols.append(
                xp[:, di:di + Ho * stride:stride, dj:dj + Wo * stride:stride, :])
    patches = jnp.stack(cols, axis=3)                  # [B, Ho, Wo, k*k, c_take]
    return patches.reshape(B, Ho, Wo, k * k * c_take), Ho, Wo


def _prep_conv_params(p, cout_pad, eps=1e-5):
    """Fold BN scale into weights, reorder for im2col, pad only Cout (lanes)."""
    w, gamma, beta, mean, var = p["w"], p["gamma"], p["beta"], p["mean"], p["var"]
    Cout, Cin, kh, kw = w.shape
    scale = gamma / jnp.sqrt(var + eps)
    bias = beta - mean * scale
    w = w * scale[:, None, None, None]                              # fold scale
    w = jnp.pad(w, ((0, cout_pad - Cout), (0, 0), (0, 0), (0, 0)))
    w2d = jnp.transpose(w, (2, 3, 1, 0)).reshape(kh * kw * Cin, cout_pad)
    bias2d = jnp.pad(bias, (0, cout_pad - Cout)).reshape(1, cout_pad)
    return w2d.astype(jnp.bfloat16), bias2d.astype(jnp.float32)


def init_image_encoder_params(key, in_ch=4, widths=(32, 64)):
    """Deterministic synthetic parameters (conv + BN per block)."""
    params = []
    c_in = in_ch
    for i, c_out in enumerate(widths):
        kw_key, bn_key = jax.random.split(jax.random.fold_in(key, i))
        w = 0.05 * jax.random.normal(kw_key, (c_out, c_in, 3, 3), jnp.float32)
        gamma = 1.0 + 0.01 * jax.random.normal(bn_key, (c_out,), jnp.float32)
        beta = jnp.zeros((c_out,), jnp.float32)
        mean = jnp.zeros((c_out,), jnp.float32)
        var = jnp.ones((c_out,), jnp.float32)
        params.append(dict(w=w, gamma=gamma, beta=beta, mean=mean, var=var))
        c_in = c_out
    return params


def prepare_encoder_params(raw_params, in_ch):
    """One-time host-side BN fold + lane padding of output channels only."""
    p1, p2 = raw_params
    cout1 = p1["w"].shape[0]
    cout2 = p2["w"].shape[0]
    n1 = _round_up(cout1, LANE)          # lane-dense y1 store
    n2 = _round_up(cout2, LANE)
    w1, b1 = _prep_conv_params(p1, cout_pad=n1)   # K1 = 9*in_ch   (no K pad)
    w2, b2 = _prep_conv_params(p2, cout_pad=n2)   # K2 = 9*cout1   (no leaked pad)
    return dict(w1=w1, b1=b1, n1=n1, cout1=cout1,
                w2=w2, b2=b2, n2=n2, cout2=cout2)


# -----------------------------------------------------------------------------
# Forward pass: NCHW image -> pooled features [B, C_feat]
# -----------------------------------------------------------------------------
def image_encoder_forward(x_nchw, prep):
    # NCHW (PyTorch) -> NHWC (kernel layout), bf16 MXU operands.
    x = jnp.transpose(x_nchw, (0, 2, 3, 1)).astype(jnp.bfloat16)
    B = x.shape[0]

    # ---- block 1: 3x3 conv (stride 1) + folded BN + ReLU ------------------
    patches, ho, wo = _im2col(x, 3, stride=1, pad=1)
    M = B * ho * wo
    tm = min(512, _round_up(M, 8))
    Mp = _round_up(M, tm)
    K1 = patches.shape[-1]                           # 9*Cin, NOT lane-padded
    p2d = patches.reshape(M, K1)
    if Mp != M:
        p2d = jnp.pad(p2d, ((0, Mp - M), (0, 0)))
    tn1 = 256 if prep["n1"] % 256 == 0 else LANE     # 256-wide tiles when possible
    y1 = fused_conv_bn_relu_gemm(p2d, prep["w1"], prep["b1"], tm=tm, tn=tn1)
    # Padded M rows produce ReLU(bias) != 0 -> must be sliced off before block 2.
    y1 = y1[:M].reshape(B, ho, wo, prep["n1"])

    # ---- block 2: 3x3 conv (stride 2) + BN + ReLU + global avg pool -------
    # Only the real cout1 channels are gathered, so the lane padding of y1
    # does not inflate layer-2's K (K2 = 9*cout1, not 9*n1).
    patches2, ho2, wo2 = _im2col(y1, 3, stride=2, pad=1, c_take=prep["cout1"])
    hw2 = ho2 * wo2
    p3d = patches2.reshape(B, hw2, patches2.shape[-1])
    t_hw = _pick_hw_tile(hw2)
    tn2 = 256 if prep["n2"] % 256 == 0 else LANE
    feats = fused_conv_bn_relu_gap(p3d, prep["w2"], prep["b2"],
                                   t_hw=t_hw, tn=tn2)
    return feats[:, 0, :prep["cout2"]]               # drop lane padding -> [B, C_feat]


# -----------------------------------------------------------------------------
# Pure-JAX reference (f32) for a tolerance check
# -----------------------------------------------------------------------------
def reference_forward(x_nchw, raw_params, eps=1e-5):
    x = jnp.transpose(x_nchw, (0, 2, 3, 1)).astype(jnp.float32)
    strides = (1, 2)
    for p, s in zip(raw_params, strides):
        w = jnp.transpose(p["w"], (2, 3, 1, 0))       # HWIO
        y = jax.lax.conv_general_dilated(
            x, w, (s, s), ((1, 1), (1, 1)),
            dimension_numbers=("NHWC", "HWIO", "NHWC"))
        scale = p["gamma"] / jnp.sqrt(p["var"] + eps)
        y = (y - p["mean"]) * scale + p["beta"]
        x = jnp.maximum(y, 0.0)
    return jnp.mean(x, axis=(1, 2))


# -----------------------------------------------------------------------------
# Main
# -----------------------------------------------------------------------------
if __name__ == "__main__":
    key = jax.random.PRNGKey(0)
    x_key, p_key = jax.random.split(key)

    B, C, H, W = 2, 4, 16, 16
    x = jax.random.normal(x_key, (B, C, H, W), jnp.float32)   # NCHW like PyTorch

    raw_params = init_image_encoder_params(p_key, in_ch=C, widths=(32, 64))
    prep = prepare_encoder_params(raw_params, in_ch=C)

    fwd = jax.jit(functools.partial(image_encoder_forward, prep=prep))
    feats = fwd(x)
    jax.block_until_ready(feats)

    assert feats.shape == (B, 64), feats.shape
    assert bool(jnp.all(jnp.isfinite(feats)))

    ref = reference_forward(x, raw_params)
    err = float(jnp.max(jnp.abs(feats.astype(jnp.float32) - ref)))
    assert err < 5e-2, f"max abs err {err}"            # bf16 operands vs f32 ref
    print("KERNEL_OK")
</pallas_src>

<mosaic_0001>
module attributes {stable_mosaic.version = 11 : i64} {
  func.func @_conv_bn_relu_kernel(%arg0: i32, %arg1: i32, %arg2: memref<512x36xbf16, #tpu.memory_space<vmem>>, %arg3: memref<36x128xbf16, #tpu.memory_space<vmem>>, %arg4: memref<1x128xf32, #tpu.memory_space<vmem>>, %arg5: memref<512x128xbf16, #tpu.memory_space<vmem>>) attributes {dimension_semantics = [#tpu.dimension_semantics<parallel>, #tpu.dimension_semantics<parallel>], iteration_bounds = array<i64: 1, 1>, scalar_prefetch = 0 : i64, scratch_operands = 0 : i64, tpu.core_type = #tpu.core_type<tc>, window_params = [{transform_indices = @transform_0, window_bounds = array<i64: 512, 36>}, {transform_indices = @transform_1, window_bounds = array<i64: 36, 128>}, {transform_indices = @transform_2, window_bounds = array<i64: 1, 128>}, {transform_indices = @transform_3, window_bounds = array<i64: 512, 128>}]} {
    %c0 = arith.constant 0 : index
    %c0_0 = arith.constant 0 : index
    %0 = vector.load %arg2[%c0, %c0_0] : memref<512x36xbf16, #tpu.memory_space<vmem>>, vector<512x36xbf16>
    %c0_1 = arith.constant 0 : index
    %c0_2 = arith.constant 0 : index
    %1 = vector.load %arg3[%c0_1, %c0_2] : memref<36x128xbf16, #tpu.memory_space<vmem>>, vector<36x128xbf16>
    %cst = arith.constant dense<0.000000e+00> : vector<512x128xf32>
    %2 = tpu.matmul %0, %1, %cst {dimension_numbers = #tpu.dot_dimension_numbers<[1], [0], [0], [1], [0, 0, 1, 1], [], []>} : vector<512x36xbf16>, vector<36x128xbf16>, vector<512x128xf32> -> vector<512x128xf32>
    %c0_3 = arith.constant 0 : index
    %c0_4 = arith.constant 0 : index
    %3 = vector.load %arg4[%c0_3, %c0_4] : memref<1x128xf32, #tpu.memory_space<vmem>>, vector<1x128xf32>
    %4 = vector.broadcast %3 : vector<1x128xf32> to vector<512x128xf32>
    %5 = arith.addf %2, %4 : vector<512x128xf32>
    %cst_5 = arith.constant 0.000000e+00 : f32
    %6 = vector.broadcast %cst_5 : f32 to vector<512x128xf32>
    %7 = arith.maximumf %5, %6 : vector<512x128xf32>
    %8 = arith.truncf %7 : vector<512x128xf32> to vector<512x128xbf16>
    %c0_6 = arith.constant 0 : index
    %c0_7 = arith.constant 0 : index
    %9 = vector.load %arg5[%c0_6, %c0_7] : memref<512x128xbf16, #tpu.memory_space<vmem>>, vector<512x128xbf16>
    tpu.vector_store %arg5[%c0_6, %c0_7], %8 {strides = array<i32>} : memref<512x128xbf16, #tpu.memory_space<vmem>>, vector<512x128xbf16>,
    return
  }
  func.func @transform_0(%arg0: i32, %arg1: i32) -> (i32, i32) {
    %c0_i32 = arith.constant 0 : i32
    %c0_i32_0 = arith.constant 0 : i32
    return %arg0, %c0_i32 : i32, i32
  }
  func.func @transform_1(%arg0: i32, %arg1: i32) -> (i32, i32) {
    %c0_i32 = arith.constant 0 : i32
    %c0_i32_0 = arith.constant 0 : i32
    return %c0_i32, %arg1 : i32, i32
  }
  func.func @transform_2(%arg0: i32, %arg1: i32) -> (i32, i32) {
    %c0_i32 = arith.constant 0 : i32
    %c0_i32_0 = arith.constant 0 : i32
    return %c0_i32, %arg1 : i32, i32
  }
  func.func @transform_3(%arg0: i32, %arg1: i32) -> (i32, i32) {
    %c0_i32 = arith.constant 0 : i32
    return %arg0, %arg1 : i32, i32
  }
}

module attributes {stable_mosaic.version = 11 : i64} {
  func.func @_conv_bn_relu_gap_kernel(%arg0: i32, %arg1: i32, %arg2: i32, %arg3: memref<1x64x288xbf16, #tpu.memory_space<vmem>>, %arg4: memref<288x128xbf16, #tpu.memory_space<vmem>>, %arg5: memref<1x128xf32, #tpu.memory_space<vmem>>, %arg6: memref<1x1x128xf32, #tpu.memory_space<vmem>>) attributes {dimension_semantics = [#tpu.dimension_semantics<parallel>, #tpu.dimension_semantics<parallel>, #tpu.dimension_semantics<arbitrary>], iteration_bounds = array<i64: 2, 1, 1>, scalar_prefetch = 0 : i64, scratch_operands = 0 : i64, tpu.core_type = #tpu.core_type<tc>, window_params = [{transform_indices = @transform_0, window_bounds = array<i64: 1, 64, 288>}, {transform_indices = @transform_1, window_bounds = array<i64: 288, 128>}, {transform_indices = @transform_2, window_bounds = array<i64: 1, 128>}, {transform_indices = @transform_3, window_bounds = array<i64: 1, 1, 128>}]} {
    %c0_i32 = arith.constant 0 : i32
    %0 = arith.cmpi eq, %arg2, %c0_i32 : i32
    %1 = arith.extui %0 : i1 to i32
    %c0_i32_0 = arith.constant 0 : i32
    %2 = arith.cmpi ne, %1, %c0_i32_0 : i32
    scf.if %2 {
      %cst_16 = arith.constant 0.000000e+00 : f32
      %20 = vector.broadcast %cst_16 : f32 to vector<1x1x128xf32>
      %c0_17 = arith.constant 0 : index
      %c0_18 = arith.constant 0 : index
      %c0_19 = arith.constant 0 : index
      %21 = vector.load %arg6[%c0_17, %c0_18, %c0_19] : memref<1x1x128xf32, #tpu.memory_space<vmem>>, vector<1x1x128xf32>
      tpu.vector_store %arg6[%c0_17, %c0_18, %c0_19], %20 {strides = array<i32>} : memref<1x1x128xf32, #tpu.memory_space<vmem>>, vector<1x1x128xf32>,
    } else {
    }
    %c0 = arith.constant 0 : index
    %c0_1 = arith.constant 0 : index
    %c0_2 = arith.constant 0 : index
    %3 = vector.load %arg3[%c0, %c0_1, %c0_2] : memref<1x64x288xbf16, #tpu.memory_space<vmem>>, vector<1x64x288xbf16>
    %4 = vector.shape_cast %3 : vector<1x64x288xbf16> to vector<64x288xbf16>
    %c0_3 = arith.constant 0 : index
    %c0_4 = arith.constant 0 : index
    %5 = vector.load %arg4[%c0_3, %c0_4] : memref<288x128xbf16, #tpu.memory_space<vmem>>, vector<288x128xbf16>
    %cst = arith.constant dense<0.000000e+00> : vector<64x128xf32>
    %6 = tpu.matmul %4, %5, %cst {dimension_numbers = #tpu.dot_dimension_numbers<[1], [0], [0], [1], [0, 0, 1, 1], [], []>} : vector<64x288xbf16>, vector<288x128xbf16>, vector<64x128xf32> -> vector<64x128xf32>
    %c0_5 = arith.constant 0 : index
    %c0_6 = arith.constant 0 : index
    %7 = vector.load %arg5[%c0_5, %c0_6] : memref<1x128xf32, #tpu.memory_space<vmem>>, vector<1x128xf32>
    %8 = vector.broadcast %7 : vector<1x128xf32> to vector<64x128xf32>
    %9 = arith.addf %6, %8 : vector<64x128xf32>
    %cst_7 = arith.constant 0.000000e+00 : f32
    %10 = vector.broadcast %cst_7 : f32 to vector<64x128xf32>
    %11 = arith.maximumf %9, %10 : vector<64x128xf32>
    %cst_8 = arith.constant dense<0.000000e+00> : vector<128xf32>
    %12 = vector.multi_reduction <add>, %11, %cst_8 [0] : vector<64x128xf32> to vector<128xf32>
    %13 = vector.shape_cast %12 : vector<128xf32> to vector<1x128xf32>
    %cst_9 = arith.constant 1.562500e-02 : f32
    %14 = vector.broadcast %cst_9 : f32 to vector<1x128xf32>
    %15 = arith.mulf %13, %14 : vector<1x128xf32>
    %c0_10 = arith.constant 0 : index
    %c0_11 = arith.constant 0 : index
    %c0_12 = arith.constant 0 : index
    %16 = vector.load %arg6[%c0_10, %c0_11, %c0_12] : memref<1x1x128xf32, #tpu.memory_space<vmem>>, vector<1x1x128xf32>
    %17 = vector.shape_cast %15 : vector<1x128xf32> to vector<1x1x128xf32>
    %18 = arith.addf %16, %17 : vector<1x1x128xf32>
    %c0_13 = arith.constant 0 : index
    %c0_14 = arith.constant 0 : index
    %c0_15 = arith.constant 0 : index
    %19 = vector.load %arg6[%c0_13, %c0_14, %c0_15] : memref<1x1x128xf32, #tpu.memory_space<vmem>>, vector<1x1x128xf32>
    tpu.vector_store %arg6[%c0_13, %c0_14, %c0_15], %18 {strides = array<i32>} : memref<1x1x128xf32, #tpu.memory_space<vmem>>, vector<1x1x128xf32>,
    return
  }
  func.func @transform_0(%arg0: i32, %arg1: i32, %arg2: i32) -> (i32, i32, i32) {
    %c0_i32 = arith.constant 0 : i32
    %c0_i32_0 = arith.constant 0 : i32
    return %arg0, %arg2, %c0_i32 : i32, i32, i32
  }
  func.func @transform_1(%arg0: i32, %arg1: i32, %arg2: i32) -> (i32, i32) {
    %c0_i32 = arith.constant 0 : i32
    %c0_i32_0 = arith.constant 0 : i32
    return %c0_i32, %arg1 : i32, i32
  }
  func.func @transform_2(%arg0: i32, %arg1: i32, %arg2: i32) -> (i32, i32) {
    %c0_i32 = arith.constant 0 : i32
    %c0_i32_0 = arith.constant 0 : i32
    return %c0_i32, %arg1 : i32, i32
  }
  func.func @transform_3(%arg0: i32, %arg1: i32, %arg2: i32) -> (i32, i32, i32) {
    %c0_i32 = arith.constant 0 : i32
    %c0_i32_0 = arith.constant 0 : i32
    return %arg0, %c0_i32, %arg1 : i32, i32, i32
  }
}

</mosaic_0001>

<llo_original>
// kernel: image_encoder_forward.2
$region0: #{image_encoder_forward.2}
  #allocation0 [shape = 'u32[]', space=smem, size = 0x4, offset = 0x4, fixed_abs, tag = 'smem constant byte address 0x4 - core index']
  #allocation1 [shape = 'u32[144,128]{1,0:T(1,128)}', space=vmem, size = 0x12000, scoped, tag = 'internal scratch']
  %s0 = inlined_call_operand.vmem [shape: bf16[512,36], index: 0, kind: input, shape index: {}]
  %s1 = inlined_call_operand.vmem [shape: bf16[36,128], index: 1, kind: input, shape index: {}]
  %s2 = inlined_call_operand.vmem [shape: f32[1,128], index: 2, kind: input, shape index: {}]
  %s3 = inlined_call_operand.vmem [shape: bf16[512,128], index: 3, kind: output, shape index: {}]
  %s4 = sld [smem:[#allocation0]]
  $region22: #{image_encoder_forward.2} parent=0
    _
  %s6 = ssub.s32 1, %s4
  %s7 = scalar_select 0, %s6, %s4
  // Predicated region
  $region2: #{image_encoder_forward.2} parent=0 // pred_check
    _
  $region3: #{image_encoder_forward.2} parent=0 // pred_check_branch
    %9 = sbr.rel (0) target = $region5
  $region4: #{image_encoder_forward.2} parent=0 // pred_region
    _
  $region5: #{image_encoder_forward.2} parent=0 // pred_fallthru
    _
  // Predicated region
  $region6: #{image_encoder_forward.2} parent=0 // pred_check
    _
  $region7: #{image_encoder_forward.2} parent=0 // pred_check_branch
    %11 = sbr.rel (0) target = $region9
  $region8: #{image_encoder_forward.2} parent=0 // pred_region
    _
  $region9: #{image_encoder_forward.2} parent=0 // pred_fallthru
    _
  // Predicated region
  $region10: #{image_encoder_forward.2} parent=0 // pred_check
    _
  $region11: #{image_encoder_forward.2} parent=0 // pred_check_branch
    %13 = sbr.rel (0) target = $region13
  $region12: #{image_encoder_forward.2} parent=0 // pred_region
    _
  $region13: #{image_encoder_forward.2} parent=0 // pred_fallthru
    _
  %v15 = vld [vmem:[%s0] sm:$0xf]
  %v16 = vld [vmem:[%s0 + $0x4] sm:$0xf]
  %v17 = vld [vmem:[%s0 + $0x8] sm:$0xf]
  %v18 = vld [vmem:[%s0 + $0xc] sm:$0xf]
  %v19 = vld [vmem:[%s0 + $0x10] sm:$0xf]
  %v20 = vld [vmem:[%s0 + $0x14] sm:$0xf]
  %v21 = vld [vmem:[%s0 + $0x18] sm:$0xf]
  %v22 = vld [vmem:[%s0 + $0x1c] sm:$0xf]
  %v23 = vld [vmem:[%s0 + $0x20] sm:$0xf]
  %v24 = vld [vmem:[%s0 + $0x24] sm:$0xf]
  %v25 = vld [vmem:[%s0 + $0x28] sm:$0xf]
  %v26 = vld [vmem:[%s0 + $0x2c] sm:$0xf]
  %v27 = vld [vmem:[%s0 + $0x30] sm:$0xf]
  %v28 = vld [vmem:[%s0 + $0x34] sm:$0xf]
  %v29 = vld [vmem:[%s0 + $0x38] sm:$0xf]
  %v30 = vld [vmem:[%s0 + $0x3c] sm:$0xf]
  %v31 = vld [vmem:[%s0 + $0x40] sm:$0xf]
  %v32 = vld [vmem:[%s0 + $0x44] sm:$0xf]
  %v33 = vld [vmem:[%s0 + $0x48] sm:$0xf]
  %v34 = vld [vmem:[%s0 + $0x4c] sm:$0xf]
  %v35 = vld [vmem:[%s0 + $0x50] sm:$0xf]
  %v36 = vld [vmem:[%s0 + $0x54] sm:$0xf]
  %v37 = vld [vmem:[%s0 + $0x58] sm:$0xf]
  %v38 = vld [vmem:[%s0 + $0x5c] sm:$0xf]
  %v39 = vld [vmem:[%s0 + $0x60] sm:$0xf]
  %v40 = vld [vmem:[%s0 + $0x64] sm:$0xf]
  %v41 = vld [vmem:[%s0 + $0x68] sm:$0xf]
  %v42 = vld [vmem:[%s0 + $0x6c] sm:$0xf]
  %v43 = vld [vmem:[%s0 + $0x70] sm:$0xf]
  %v44 = vld [vmem:[%s0 + $0x74] sm:$0xf]
  %v45 = vld [vmem:[%s0 + $0x78] sm:$0xf]
  %v46 = vld [vmem:[%s0 + $0x7c] sm:$0xf]
  %v47 = vld [vmem:[%s0 + $0x80] sm:$0xf]
  %v48 = vld [vmem:[%s0 + $0x84] sm:$0xf]
  %v49 = vld [vmem:[%s0 + $0x88] sm:$0xf]
  %v50 = vld [vmem:[%s0 + $0x8c] sm:$0xf]
  %v51 = vld [vmem:[%s0 + $0x90] sm:$0xf]
  %v52 = vld [vmem:[%s0 + $0x94] sm:$0xf]
  %v53 = vld [vmem:[%s0 + $0x98] sm:$0xf]
  %v54 = vld [vmem:[%s0 + $0x9c] sm:$0xf]
  %v55 = vld [vmem:[%s0 + $0xa0] sm:$0xf]
  %v56 = vld [vmem:[%s0 + $0xa4] sm:$0xf]
  %v57 = vld [vmem:[%s0 + $0xa8] sm:$0xf]
  %v58 = vld [vmem:[%s0 + $0xac] sm:$0xf]
  %v59 = vld [vmem:[%s0 + $0xb0] sm:$0xf]
  %v60 = vld [vmem:[%s0 + $0xb4] sm:$0xf]
  %v61 = vld [vmem:[%s0 + $0xb8] sm:$0xf]
  %v62 = vld [vmem:[%s0 + $0xbc] sm:$0xf]
  %v63 = vld [vmem:[%s0 + $0xc0] sm:$0xf]
  %v64 = vld [vmem:[%s0 + $0xc4] sm:$0xf]
  %v65 = vld [vmem:[%s0 + $0xc8] sm:$0xf]
  %v66 = vld [vmem:[%s0 + $0xcc] sm:$0xf]
  %v67 = vld [vmem:[%s0 + $0xd0] sm:$0xf]
  %v68 = vld [vmem:[%s0 + $0xd4] sm:$0xf]
  %v69 = vld [vmem:[%s0 + $0xd8] sm:$0xf]
  %v70 = vld [vmem:[%s0 + $0xdc] sm:$0xf]
  %v71 = vld [vmem:[%s0 + $0xe0] sm:$0xf]
  %v72 = vld [vmem:[%s0 + $0xe4] sm:$0xf]
  %v73 = vld [vmem:[%s0 + $0xe8] sm:$0xf]
  %v74 = vld [vmem:[%s0 + $0xec] sm:$0xf]
  %v75 = vld [vmem:[%s0 + $0xf0] sm:$0xf]
  %v76 = vld [vmem:[%s0 + $0xf4] sm:$0xf]
  %v77 = vld [vmem:[%s0 + $0xf8] sm:$0xf]
  %v78 = vld [vmem:[%s0 + $0xfc] sm:$0xf]
  %v79 = vld [vmem:[%s1] sm:$0xf]
  %v80 = vld [vmem:[%s1 + $0x4] sm:$0xf]
  %v81 = vld [vmem:[%s1 + $0x8] sm:$0xf]
  %v82 = vld [vmem:[%s1 + $0xc] sm:$0xf]
  %v83 = vld [vmem:[%s1 + $0x10] sm:$0x3]
  %v84 = vld [vmem:[%s2] sm:$0x1]
  %v86 = vlaneseq
  %v87 = vshrl.u32 %v86, 7
  %v88 = vsub.s32 0, %v87
  %v89 = vrot.slane %v84, %v88
  %v155 = vunpack.c.l.b16 %v15
  %v156 = vunpack.c.l.b16 %v16
  %v157 = vunpack.c.l.b16 %v17
  %v158 = vunpack.c.l.b16 %v18
  %v159 = vunpack.c.l.b16 %v19
  %v160 = vunpack.c.l.b16 %v20
  %v161 = vunpack.c.l.b16 %v21
  %v162 = vunpack.c.l.b16 %v22
  %v163 = vunpack.c.l.b16 %v23
  %v164 = vunpack.c.l.b16 %v24
  %v165 = vunpack.c.l.b16 %v25
  %v166 = vunpack.c.l.b16 %v26
  %v167 = vunpack.c.l.b16 %v27
  %v168 = vunpack.c.l.b16 %v28
  %v169 = vunpack.c.l.b16 %v29
  %v170 = vunpack.c.l.b16 %v30
  %v171 = vunpack.c.l.b16 %v31
  %v172 = vunpack.c.l.b16 %v32
  %v173 = vunpack.c.l.b16 %v33
  %v174 = vunpack.c.l.b16 %v34
  %v175 = vunpack.c.l.b16 %v35
  %v176 = vunpack.c.l.b16 %v36
  %v177 = vunpack.c.l.b16 %v37
  %v178 = vunpack.c.l.b16 %v38
  %v179 = vunpack.c.l.b16 %v39
  %v180 = vunpack.c.l.b16 %v40
  %v181 = vunpack.c.l.b16 %v41
  %v182 = vunpack.c.l.b16 %v42
  %v183 = vunpack.c.l.b16 %v43
  %v184 = vunpack.c.l.b16 %v44
  %v185 = vunpack.c.l.b16 %v45
  %v186 = vunpack.c.l.b16 %v46
  %v187 = vunpack.c.l.b16 %v47
  %v188 = vunpack.c.l.b16 %v48
  %v189 = vunpack.c.l.b16 %v49
  %v190 = vunpack.c.l.b16 %v50
  %v191 = vunpack.c.l.b16 %v51
  %v192 = vunpack.c.l.b16 %v52
  %v193 = vunpack.c.l.b16 %v53
  %v194 = vunpack.c.l.b16 %v54
  %v195 = vunpack.c.l.b16 %v55
  %v196 = vunpack.c.l.b16 %v56
  %v197 = vunpack.c.l.b16 %v57
  %v198 = vunpack.c.l.b16 %v58
  %v199 = vunpack.c.l.b16 %v59
  %v200 = vunpack.c.l.b16 %v60
  %v201 = vunpack.c.l.b16 %v61
  %v202 = vunpack.c.l.b16 %v62
  %v203 = vunpack.c.l.b16 %v63
  %v204 = vunpack.c.l.b16 %v64
  %v205 = vunpack.c.l.b16 %v65
  %v206 = vunpack.c.l.b16 %v66
  %v207 = vunpack.c.l.b16 %v67
  %v208 = vunpack.c.l.b16 %v68
  %v209 = vunpack.c.l.b16 %v69
  %v210 = vunpack.c.l.b16 %v70
  %v211 = vunpack.c.l.b16 %v71
  %v212 = vunpack.c.l.b16 %v72
  %v213 = vunpack.c.l.b16 %v73
  %v214 = vunpack.c.l.b16 %v74
  %v215 = vunpack.c.l.b16 %v75
  %v216 = vunpack.c.l.b16 %v76
  %v217 = vunpack.c.l.b16 %v77
  %v218 = vunpack.c.l.b16 %v78
  %v219 = vpack.c.b16 %v156, %v155
  %v220 = vpack.c.b16 %v158, %v157
  %v221 = vpack.c.b16 %v160, %v159
  %v222 = vpack.c.b16 %v162, %v161
  %v223 = vpack.c.b16 %v164, %v163
  %v224 = vpack.c.b16 %v166, %v165
  %v225 = vpack.c.b16 %v168, %v167
  %v226 = vpack.c.b16 %v170, %v169
  %v227 = vpack.c.b16 %v172, %v171
  %v228 = vpack.c.b16 %v174, %v173
  %v229 = vpack.c.b16 %v176, %v175
  %v230 = vpack.c.b16 %v178, %v177
  %v231 = vpack.c.b16 %v180, %v179
  %v232 = vpack.c.b16 %v182, %v181
  %v233 = vpack.c.b16 %v184, %v183
  %v234 = vpack.c.b16 %v186, %v185
  %v235 = vpack.c.b16 %v188, %v187
  %v236 = vpack.c.b16 %v190, %v189
  %v237 = vpack.c.b16 %v192, %v191
  %v238 = vpack.c.b16 %v194, %v193
  %v239 = vpack.c.b16 %v196, %v195
  %v240 = vpack.c.b16 %v198, %v197
  %v241 = vpack.c.b16 %v200, %v199
  %v242 = vpack.c.b16 %v202, %v201
  %v243 = vpack.c.b16 %v204, %v203
  %v244 = vpack.c.b16 %v206, %v205
  %v245 = vpack.c.b16 %v208, %v207
  %v246 = vpack.c.b16 %v210, %v209
  %v247 = vpack.c.b16 %v212, %v211
  %v248 = vpack.c.b16 %v214, %v213
  %v249 = vpack.c.b16 %v216, %v215
  %v250 = vpack.c.b16 %v218, %v217
  %v256 = vunpack.c.l.b16 %v79
  %v257 = vunpack.c.l.b16 %v80
  %v258 = vunpack.c.l.b16 %v81
  %v259 = vunpack.c.l.b16 %v82
  %v260 = vunpack.c.l.b16 %v83
  %v261 = vpack.c.b16 %v257, %v256
  %v262 = vpack.c.b16 %v259, %v258
  %v263 = vpack.c.b16 %v260, %v260
  %vm266 = vcmask 293888
  %v268 = vsel %vm266, %v219, 0
  %v271 = vsel %vm266, %v220, 0
  %v274 = vsel %vm266, %v221, 0
  %v277 = vsel %vm266, %v222, 0
  %v280 = vsel %vm266, %v223, 0
  %v283 = vsel %vm266, %v224, 0
  %v286 = vsel %vm266, %v225, 0
  %v289 = vsel %vm266, %v226, 0
  %v292 = vsel %vm266, %v227, 0
  %v295 = vsel %vm266, %v228, 0
  %v298 = vsel %vm266, %v229, 0
  %v301 = vsel %vm266, %v230, 0
  %v304 = vsel %vm266, %v231, 0
  %v307 = vsel %vm266, %v232, 0
  %v310 = vsel %vm266, %v233, 0
  %v313 = vsel %vm266, %v234, 0
  %v316 = vsel %vm266, %v235, 0
  %v319 = vsel %vm266, %v236, 0
  %v322 = vsel %vm266, %v237, 0
  %v325 = vsel %vm266, %v238, 0
  %v328 = vsel %vm266, %v239, 0
  %v331 = vsel %vm266, %v240, 0
  %v334 = vsel %vm266, %v241, 0
  %v337 = vsel %vm266, %v242, 0
  %v340 = vsel %vm266, %v243, 0
  %v343 = vsel %vm266, %v244, 0
  %v346 = vsel %vm266, %v245, 0
  %v349 = vsel %vm266, %v246, 0
  %v352 = vsel %vm266, %v247, 0
  %v355 = vsel %vm266, %v248, 0
  %v358 = vsel %vm266, %v249, 0
  %v361 = vsel %vm266, %v250, 0
  %vm363 = vcmask 1041408
  %v365 = vsel %vm363, %v263, 0
  %367 = vmatprep.subr.bf16.mxu0 0
  %368 = vmatpush1.bf16.msra.mxu0 %v261
  %369 = vmatprep.subr.bf16.mxu0 0
  %370 = vmatpush1.bf16.msra.mxu0 %v262
  %371 = vmatprep.subr.bf16.mxu0 0
  %372 = vmatpush1.bf16.msra.mxu0 %v365
  %373 = vmatprep.subr.bf16.mxu0 0
  %374 = vmatpush1.bf16.msra.mxu0 0
  %375 = vmatprep.subr.bf16.mxu0 0
  %376 = vmatpush1.bf16.msra.mxu0 0
  %377 = vmatprep.subr.bf16.mxu0 0
  %378 = vmatpush1.bf16.msra.mxu0 0
  %379 = vmatprep.subr.bf16.mxu0 0
  %380 = vmatpush1.bf16.msra.mxu0 0
  %381 = vmatprep.subr.bf16.mxu0 0
  %382 = vmatpush1.bf16.msra.mxu0 0
  %383 = vmatprep.subr.bf16.mxu0 0
  %384 = vmatpush1.bf16.msra.mxu0 0
  %385 = vmatprep.subr.bf16.mxu0 0
  %386 = vmatpush1.bf16.msra.mxu0 0
  %387 = vmatprep.subr.bf16.mxu0 0
  %388 = vmatpush1.bf16.msra.mxu0 0
  %389 = vmatprep.subr.bf16.mxu0 0
  %390 = vmatpush1.bf16.msra.mxu0 0
  %391 = vmatprep.subr.bf16.mxu0 0
  %392 = vmatpush1.bf16.msra.mxu0 0
  %393 = vmatprep.subr.bf16.mxu0 0
  %394 = vmatpush1.bf16.msra.mxu0 0
  %395 = vmatprep.subr.bf16.mxu0 0
  %396 = vmatpush1.bf16.msra.mxu0 0
  %397 = vmatprep.subr.bf16.mxu0 0
  %398 = vmatpush1.bf16.msra.mxu0 0
  %399 = vmatprep.mubr.bf16.mxu0 0
  %400 = vmatmul.mubr.bf16.gmra.mrb[0].mxu0 %v268
  %v401 = vpop.f32.mrb[0].mxu0
  %v402 = vadd.f32 %v89, %v401
  %v403 = vpop.f32.mrb[0].mxu0
  %v404 = vpop.f32.mrb[0].mxu0
  %v405 = vadd.f32 %v89, %v404
  %v406 = vpop.f32.mrb[0].mxu0
  %407 = vmatprep.mubr.bf16.mxu0 0
  %408 = vmatmul.mubr.bf16.gmra.mrb[0].mxu0 %v271
  %v409 = vpop.f32.mrb[0].mxu0
  %v410 = vadd.f32 %v89, %v409
  %v411 = vpop.f32.mrb[0].mxu0
  %v412 = vpop.f32.mrb[0].mxu0
  %v413 = vadd.f32 %v89, %v412
  %v414 = vpop.f32.mrb[0].mxu0
  %415 = vmatprep.mubr.bf16.mxu0 0
  %416 = vmatmul.mubr.bf16.gmra.mrb[0].mxu0 %v274
  %v417 = vpop.f32.mrb[0].mxu0
  %v418 = vadd.f32 %v89, %v417
  %v419 = vpop.f32.mrb[0].mxu0
  %v420 = vpop.f32.mrb[0].mxu0
  %v421 = vadd.f32 %v89, %v420
  %v422 = vpop.f32.mrb[0].mxu0
  %423 = vmatprep.mubr.bf16.mxu0 0
  %424 = vmatmul.mubr.bf16.gmra.mrb[0].mxu0 %v277
  %v425 = vpop.f32.mrb[0].mxu0
  %v426 = vadd.f32 %v89, %v425
  %v427 = vpop.f32.mrb[0].mxu0
  %v428 = vpop.f32.mrb[0].mxu0
  %v429 = vadd.f32 %v89, %v428
  %v430 = vpop.f32.mrb[0].mxu0
  %431 = vmatprep.mubr.bf16.mxu0 0
  %432 = vmatmul.mubr.bf16.gmra.mrb[0].mxu0 %v280
  %v433 = vpop.f32.mrb[0].mxu0
  %v434 = vadd.f32 %v89, %v433
  %v435 = vpop.f32.mrb[0].mxu0
  %v436 = vpop.f32.mrb[0].mxu0
  %v437 = vadd.f32 %v89, %v436
  %v438 = vpop.f32.mrb[0].mxu0
  %439 = vmatprep.mubr.bf16.mxu0 0
  %440 = vmatmul.mubr.bf16.gmra.mrb[0].mxu0 %v283
  %v441 = vpop.f32.mrb[0].mxu0
  %v442 = vadd.f32 %v89, %v441
  %v443 = vpop.f32.mrb[0].mxu0
  %v444 = vpop.f32.mrb[0].mxu0
  %v445 = vadd.f32 %v89, %v444
  %v446 = vpop.f32.mrb[0].mxu0
  %447 = vmatprep.mubr.bf16.mxu0 0
  %448 = vmatmul.mubr.bf16.gmra.mrb[0].mxu0 %v286
  %v449 = vpop.f32.mrb[0].mxu0
  %v450 = vadd.f32 %v89, %v449
  %v451 = vpop.f32.mrb[0].mxu0
  %v452 = vpop.f32.mrb[0].mxu0
  %v453 = vadd.f32 %v89, %v452
  %v454 = vpop.f32.mrb[0].mxu0
  %455 = vmatprep.mubr.bf16.mxu0 0
  %456 = vmatmul.mubr.bf16.gmra.mrb[0].mxu0 %v289
  %v457 = vpop.f32.mrb[0].mxu0
  %v458 = vadd.f32 %v89, %v457
  %v459 = vpop.f32.mrb[0].mxu0
  %v460 = vpop.f32.mrb[0].mxu0
  %v461 = vadd.f32 %v89, %v460
  %v462 = vpop.f32.mrb[0].mxu0
  %463 = vmatprep.mubr.bf16.mxu0 0
  %464 = vmatmul.mubr.bf16.gmra.mrb[0].mxu0 %v292
  %v465 = vpop.f32.mrb[0].mxu0
  %v466 = vadd.f32 %v89, %v465
  %v467 = vpop.f32.mrb[0].mxu0
  %v468 = vpop.f32.mrb[0].mxu0
  %v469 = vadd.f32 %v89, %v468
  %v470 = vpop.f32.mrb[0].mxu0
  %471 = vmatprep.mubr.bf16.mxu0 0
  %472 = vmatmul.mubr.bf16.gmra.mrb[0].mxu0 %v295
  %v473 = vpop.f32.mrb[0].mxu0
  %v474 = vadd.f32 %v89, %v473
  %v475 = vpop.f32.mrb[0].mxu0
  %v476 = vpop.f32.mrb[0].mxu0
  %v477 = vadd.f32 %v89, %v476
  %v478 = vpop.f32.mrb[0].mxu0
  %479 = vmatprep.mubr.bf16.mxu0 0
  %480 = vmatmul.mubr.bf16.gmra.mrb[0].mxu0 %v298
  %v481 = vpop.f32.mrb[0].mxu0
  %v482 = vadd.f32 %v89, %v481
  %v483 = vpop.f32.mrb[0].mxu0
  %v484 = vpop.f32.mrb[0].mxu0
  %v485 = vadd.f32 %v89, %v484
  %v486 = vpop.f32.mrb[0].mxu0
  %487 = vmatprep.mubr.bf16.mxu0 0
  %488 = vmatmul.mubr.bf16.gmra.mrb[0].mxu0 %v301
  %v489 = vpop.f32.mrb[0].mxu0
  %v490 = vadd.f32 %v89, %v489
  %v491 = vpop.f32.mrb[0].mxu0
  %v492 = vpop.f32.mrb[0].mxu0
  %v493 = vadd.f32 %v89, %v492
  %v494 = vpop.f32.mrb[0].mxu0
  %495 = vmatprep.mubr.bf16.mxu0 0
  %496 = vmatmul.mubr.bf16.gmra.mrb[0].mxu0 %v304
  %v497 = vpop.f32.mrb[0].mxu0
  %v498 = vadd.f32 %v89, %v497
  %v499 = vpop.f32.mrb[0].mxu0
  %v500 = vpop.f32.mrb[0].mxu0
  %v501 = vadd.f32 %v89, %v500
  %v502 = vpop.f32.mrb[0].mxu0
  %503 = vmatprep.mubr.bf16.mxu0 0
  %504 = vmatmul.mubr.bf16.gmra.mrb[0].mxu0 %v307
  %v505 = vpop.f32.mrb[0].mxu0
  %v506 = vadd.f32 %v89, %v505
  %v507 = vpop.f32.mrb[0].mxu0
  %v508 = vpop.f32.mrb[0].mxu0
  %v509 = vadd.f32 %v89, %v508
  %v510 = vpop.f32.mrb[0].mxu0
  %511 = vmatprep.mubr.bf16.mxu0 0
  %512 = vmatmul.mubr.bf16.gmra.mrb[0].mxu0 %v310
  %v513 = vpop.f32.mrb[0].mxu0
  %v514 = vadd.f32 %v89, %v513
  %v515 = vpop.f32.mrb[0].mxu0
  %v516 = vpop.f32.mrb[0].mxu0
  %v517 = vadd.f32 %v89, %v516
  %v518 = vpop.f32.mrb[0].mxu0
  %519 = vmatprep.mubr.bf16.mxu0 0
  %520 = vmatmul.mubr.bf16.gmra.mrb[0].mxu0 %v313
  %v521 = vpop.f32.mrb[0].mxu0
  %v522 = vadd.f32 %v89, %v521
  %v523 = vpop.f32.mrb[0].mxu0
  %v524 = vpop.f32.mrb[0].mxu0
  %v525 = vadd.f32 %v89, %v524
  %v526 = vpop.f32.mrb[0].mxu0
  %527 = vmatprep.mubr.bf16.mxu0 0
  %528 = vmatmul.mubr.bf16.gmra.mrb[0].mxu0 %v316
  %v529 = vpop.f32.mrb[0].mxu0
  %v530 = vadd.f32 %v89, %v529
  %v531 = vpop.f32.mrb[0].mxu0
  %v532 = vpop.f32.mrb[0].mxu0
  %v533 = vadd.f32 %v89, %v532
  %v534 = vpop.f32.mrb[0].mxu0
  %535 = vmatprep.mubr.bf16.mxu0 0
  %536 = vmatmul.mubr.bf16.gmra.mrb[0].mxu0 %v319
  %v537 = vpop.f32.mrb[0].mxu0
  %v538 = vadd.f32 %v89, %v537
  %v539 = vpop.f32.mrb[0].mxu0
  %v540 = vpop.f32.mrb[0].mxu0
  %v541 = vadd.f32 %v89, %v540
  %v542 = vpop.f32.mrb[0].mxu0
  %543 = vmatprep.mubr.bf16.mxu0 0
  %544 = vmatmul.mubr.bf16.gmra.mrb[0].mxu0 %v322
  %v545 = vpop.f32.mrb[0].mxu0
  %v546 = vadd.f32 %v89, %v545
  %v547 = vpop.f32.mrb[0].mxu0
  %v548 = vpop.f32.mrb[0].mxu0
  %v549 = vadd.f32 %v89, %v548
  %v550 = vpop.f32.mrb[0].mxu0
  %551 = vmatprep.mubr.bf16.mxu0 0
  %552 = vmatmul.mubr.bf16.gmra.mrb[0].mxu0 %v325
  %v553 = vpop.f32.mrb[0].mxu0
  %v554 = vadd.f32 %v89, %v553
  %v555 = vpop.f32.mrb[0].mxu0
  %v556 = vpop.f32.mrb[0].mxu0
  %v557 = vadd.f32 %v89, %v556
  %v558 = vpop.f32.mrb[0].mxu0
  %559 = vmatprep.mubr.bf16.mxu0 0
  %560 = vmatmul.mubr.bf16.gmra.mrb[0].mxu0 %v328
  %v561 = vpop.f32.mrb[0].mxu0
  %v562 = vadd.f32 %v89, %v561
  %v563 = vpop.f32.mrb[0].mxu0
  %v564 = vpop.f32.mrb[0].mxu0
  %v565 = vadd.f32 %v89, %v564
  %v566 = vpop.f32.mrb[0].mxu0
  %567 = vmatprep.mubr.bf16.mxu0 0
  %568 = vmatmul.mubr.bf16.gmra.mrb[0].mxu0 %v331
  %v569 = vpop.f32.mrb[0].mxu0
  %v570 = vadd.f32 %v89, %v569
  %v571 = vpop.f32.mrb[0].mxu0
  %v572 = vpop.f32.mrb[0].mxu0
  %v573 = vadd.f32 %v89, %v572
  %v574 = vpop.f32.mrb[0].mxu0
  %575 = vmatprep.mubr.bf16.mxu0 0
  %576 = vmatmul.mubr.bf16.gmra.mrb[0].mxu0 %v334
  %v577 = vpop.f32.mrb[0].mxu0
  %v578 = vadd.f32 %v89, %v577
  %v579 = vpop.f32.mrb[0].mxu0
  %v580 = vpop.f32.mrb[0].mxu0
  %v581 = vadd.f32 %v89, %v580
  %v582 = vpop.f32.mrb[0].mxu0
  %583 = vmatprep.mubr.bf16.mxu0 0
  %584 = vmatmul.mubr.bf16.gmra.mrb[0].mxu0 %v337
  %v585 = vpop.f32.mrb[0].mxu0
  %v586 = vadd.f32 %v89, %v585
  %v587 = vpop.f32.mrb[0].mxu0
  %v588 = vpop.f32.mrb[0].mxu0
  %v589 = vadd.f32 %v89, %v588
  %v590 = vpop.f32.mrb[0].mxu0
  %591 = vmatprep.mubr.bf16.mxu0 0
  %592 = vmatmul.mubr.bf16.gmra.mrb[0].mxu0 %v340
  %v593 = vpop.f32.mrb[0].mxu0
  %v594 = vadd.f32 %v89, %v593
  %v595 = vpop.f32.mrb[0].mxu0
  %v596 = vpop.f32.mrb[0].mxu0
  %v597 = vadd.f32 %v89, %v596
  %v598 = vpop.f32.mrb[0].mxu0
  %599 = vmatprep.mubr.bf16.mxu0 0
  %600 = vmatmul.mubr.bf16.gmra.mrb[0].mxu0 %v343
  %v601 = vpop.f32.mrb[0].mxu0
  %v602 = vadd.f32 %v89, %v601
  %v603 = vpop.f32.mrb[0].mxu0
  %v604 = vpop.f32.mrb[0].mxu0
  %v605 = vadd.f32 %v89, %v604
  %v606 = vpop.f32.mrb[0].mxu0
  %607 = vmatprep.mubr.bf16.mxu0 0
  %608 = vmatmul.mubr.bf16.gmra.mrb[0].mxu0 %v346
  %v609 = vpop.f32.mrb[0].mxu0
  %v610 = vadd.f32 %v89, %v609
  %v611 = vpop.f32.mrb[0].mxu0
  %v612 = vpop.f32.mrb[0].mxu0
  %v613 = vadd.f32 %v89, %v612
  %v614 = vpop.f32.mrb[0].mxu0
  %615 = vmatprep.mubr.bf16.mxu0 0
  %616 = vmatmul.mubr.bf16.gmra.mrb[0].mxu0 %v349
  %v617 = vpop.f32.mrb[0].mxu0
  %v618 = vadd.f32 %v89, %v617
  %v619 = vpop.f32.mrb[0].mxu0
  %v620 = vpop.f32.mrb[0].mxu0
  %v621 = vadd.f32 %v89, %v620
  %v622 = vpop.f32.mrb[0].mxu0
  %623 = vmatprep.mubr.bf16.mxu0 0
  %624 = vmatmul.mubr.bf16.gmra.mrb[0].mxu0 %v352
  %v625 = vpop.f32.mrb[0].mxu0
  %v626 = vadd.f32 %v89, %v625
  %v627 = vpop.f32.mrb[0].mxu0
  %v628 = vpop.f32.mrb[0].mxu0
  %v629 = vadd.f32 %v89, %v628
  %v630 = vpop.f32.mrb[0].mxu0
  %631 = vmatprep.mubr.bf16.mxu0 0
  %632 = vmatmul.mubr.bf16.gmra.mrb[0].mxu0 %v355
  %v633 = vpop.f32.mrb[0].mxu0
  %v634 = vadd.f32 %v89, %v633
  %v635 = vpop.f32.mrb[0].mxu0
  %v636 = vpop.f32.mrb[0].mxu0
  %v637 = vadd.f32 %v89, %v636
  %v638 = vpop.f32.mrb[0].mxu0
  %639 = vmatprep.mubr.bf16.mxu0 0
  %640 = vmatmul.mubr.bf16.gmra.mrb[0].mxu0 %v358
  %v641 = vpop.f32.mrb[0].mxu0
  %v642 = vadd.f32 %v89, %v641
  %v643 = vpop.f32.mrb[0].mxu0
  %v644 = vpop.f32.mrb[0].mxu0
  %v645 = vadd.f32 %v89, %v644
  %v646 = vpop.f32.mrb[0].mxu0
  %647 = vmatprep.mubr.bf16.mxu0 0
  %648 = vmatmul.mubr.bf16.gmra.mrb[0].mxu0 %v361
  %v649 = vpop.f32.mrb[0].mxu0
  %v650 = vadd.f32 %v89, %v649
  %v651 = vpop.f32.mrb[0].mxu0
  %v652 = vpop.f32.mrb[0].mxu0
  %v653 = vadd.f32 %v89, %v652
  %v654 = vpop.f32.mrb[0].mxu0
  %655 = vdwg.mxu0
  %v656 = vmax.f32 %v402, 0.0
  %v657 = vmax.f32 %v405, 0.0
  %v658 = vmax.f32 %v410, 0.0
  %v659 = vmax.f32 %v413, 0.0
  %v660 = vmax.f32 %v418, 0.0
  %v661 = vmax.f32 %v421, 0.0
  %v662 = vmax.f32 %v426, 0.0
  %v663 = vmax.f32 %v429, 0.0
  %v664 = vmax.f32 %v434, 0.0
  %v665 = vmax.f32 %v437, 0.0
  %v666 = vmax.f32 %v442, 0.0
  %v667 = vmax.f32 %v445, 0.0
  %v668 = vmax.f32 %v450, 0.0
  %v669 = vmax.f32 %v453, 0.0
  %v670 = vmax.f32 %v458, 0.0
  %v671 = vmax.f32 %v461, 0.0
  %v672 = vmax.f32 %v466, 0.0
  %v673 = vmax.f32 %v469, 0.0
  %v674 = vmax.f32 %v474, 0.0
  %v675 = vmax.f32 %v477, 0.0
  %v676 = vmax.f32 %v482, 0.0
  %v677 = vmax.f32 %v485, 0.0
  %v678 = vmax.f32 %v490, 0.0
  %v679 = vmax.f32 %v493, 0.0
  %v680 = vmax.f32 %v498, 0.0
  %v681 = vmax.f32 %v501, 0.0
  %v682 = vmax.f32 %v506, 0.0
  %v683 = vmax.f32 %v509, 0.0
  %v684 = vmax.f32 %v514, 0.0
  %v685 = vmax.f32 %v517, 0.0
  %v686 = vmax.f32 %v522, 0.0
  %v687 = vmax.f32 %v525, 0.0
  %v688 = vmax.f32 %v530, 0.0
  %v689 = vmax.f32 %v533, 0.0
  %v690 = vmax.f32 %v538, 0.0
  %v691 = vmax.f32 %v541, 0.0
  %v692 = vmax.f32 %v546, 0.0
  %v693 = vmax.f32 %v549, 0.0
  %v694 = vmax.f32 %v554, 0.0
  %v695 = vmax.f32 %v557, 0.0
  %v696 = vmax.f32 %v562, 0.0
  %v697 = vmax.f32 %v565, 0.0
  %v698 = vmax.f32 %v570, 0.0
  %v699 = vmax.f32 %v573, 0.0
  %v700 = vmax.f32 %v578, 0.0
  %v701 = vmax.f32 %v581, 0.0
  %v702 = vmax.f32 %v586, 0.0
  %v703 = vmax.f32 %v589, 0.0
  %v704 = vmax.f32 %v594, 0.0
  %v705 = vmax.f32 %v597, 0.0
  %v706 = vmax.f32 %v602, 0.0
  %v707 = vmax.f32 %v605, 0.0
  %v708 = vmax.f32 %v610, 0.0
  %v709 = vmax.f32 %v613, 0.0
  %v710 = vmax.f32 %v618, 0.0
  %v711 = vmax.f32 %v621, 0.0
  %v712 = vmax.f32 %v626, 0.0
  %v713 = vmax.f32 %v629, 0.0
  %v714 = vmax.f32 %v634, 0.0
  %v715 = vmax.f32 %v637, 0.0
  %v716 = vmax.f32 %v642, 0.0
  %v717 = vmax.f32 %v645, 0.0
  %v718 = vmax.f32 %v650, 0.0
  %v719 = vmax.f32 %v653, 0.0
  %v720 = vpack.c.bf16 %v657, %v656
  %v721 = vpack.c.bf16 %v659, %v658
  %v722 = vpack.c.bf16 %v661, %v660
  %v723 = vpack.c.bf16 %v663, %v662
  %v724 = vpack.c.bf16 %v665, %v664
  %v725 = vpack.c.bf16 %v667, %v666
  %v726 = vpack.c.bf16 %v669, %v668
  %v727 = vpack.c.bf16 %v671, %v670
  %v728 = vpack.c.bf16 %v673, %v672
  %v729 = vpack.c.bf16 %v675, %v674
  %v730 = vpack.c.bf16 %v677, %v676
  %v731 = vpack.c.bf16 %v679, %v678
  %v732 = vpack.c.bf16 %v681, %v680
  %v733 = vpack.c.bf16 %v683, %v682
  %v734 = vpack.c.bf16 %v685, %v684
  %v735 = vpack.c.bf16 %v687, %v686
  %v736 = vpack.c.bf16 %v689, %v688
  %v737 = vpack.c.bf16 %v691, %v690
  %v738 = vpack.c.bf16 %v693, %v692
  %v739 = vpack.c.bf16 %v695, %v694
  %v740 = vpack.c.bf16 %v697, %v696
  %v741 = vpack.c.bf16 %v699, %v698
  %v742 = vpack.c.bf16 %v701, %v700
  %v743 = vpack.c.bf16 %v703, %v702
  %v744 = vpack.c.bf16 %v705, %v704
  %v745 = vpack.c.bf16 %v707, %v706
  %v746 = vpack.c.bf16 %v709, %v708
  %v747 = vpack.c.bf16 %v711, %v710
  %v748 = vpack.c.bf16 %v713, %v712
  %v749 = vpack.c.bf16 %v715, %v714
  %v750 = vpack.c.bf16 %v717, %v716
  %v751 = vpack.c.bf16 %v719, %v718
  %v784 = vunpack.c.l.b16 %v720
  %v785 = vunpack.c.h.b16 %v720
  %v786 = vunpack.c.l.b16 %v721
  %v787 = vunpack.c.h.b16 %v721
  %v788 = vunpack.c.l.b16 %v722
  %v789 = vunpack.c.h.b16 %v722
  %v790 = vunpack.c.l.b16 %v723
  %v791 = vunpack.c.h.b16 %v723
  %v792 = vunpack.c.l.b16 %v724
  %v793 = vunpack.c.h.b16 %v724
  %v794 = vunpack.c.l.b16 %v725
  %v795 = vunpack.c.h.b16 %v725
  %v796 = vunpack.c.l.b16 %v726
  %v797 = vunpack.c.h.b16 %v726
  %v798 = vunpack.c.l.b16 %v727
  %v799 = vunpack.c.h.b16 %v727
  %v800 = vunpack.c.l.b16 %v728
  %v801 = vunpack.c.h.b16 %v728
  %v802 = vunpack.c.l.b16 %v729
  %v803 = vunpack.c.h.b16 %v729
  %v804 = vunpack.c.l.b16 %v730
  %v805 = vunpack.c.h.b16 %v730
  %v806 = vunpack.c.l.b16 %v731
  %v807 = vunpack.c.h.b16 %v731
  %v808 = vunpack.c.l.b16 %v732
  %v809 = vunpack.c.h.b16 %v732
  %v810 = vunpack.c.l.b16 %v733
  %v811 = vunpack.c.h.b16 %v733
  %v812 = vunpack.c.l.b16 %v734
  %v813 = vunpack.c.h.b16 %v734
  %v814 = vunpack.c.l.b16 %v735
  %v815 = vunpack.c.h.b16 %v735
  %v816 = vunpack.c.l.b16 %v736
  %v817 = vunpack.c.h.b16 %v736
  %v818 = vunpack.c.l.b16 %v737
  %v819 = vunpack.c.h.b16 %v737
  %v820 = vunpack.c.l.b16 %v738
  %v821 = vunpack.c.h.b16 %v738
  %v822 = vunpack.c.l.b16 %v739
  %v823 = vunpack.c.h.b16 %v739
  %v824 = vunpack.c.l.b16 %v740
  %v825 = vunpack.c.h.b16 %v740
  %v826 = vunpack.c.l.b16 %v741
  %v827 = vunpack.c.h.b16 %v741
  %v828 = vunpack.c.l.b16 %v742
  %v829 = vunpack.c.h.b16 %v742
  %v830 = vunpack.c.l.b16 %v743
  %v831 = vunpack.c.h.b16 %v743
  %v832 = vunpack.c.l.b16 %v744
  %v833 = vunpack.c.h.b16 %v744
  %v834 = vunpack.c.l.b16 %v745
  %v835 = vunpack.c.h.b16 %v745
  %v836 = vunpack.c.l.b16 %v746
  %v837 = vunpack.c.h.b16 %v746
  %v838 = vunpack.c.l.b16 %v747
  %v839 = vunpack.c.h.b16 %v747
  %v840 = vunpack.c.l.b16 %v748
  %v841 = vunpack.c.h.b16 %v748
  %v842 = vunpack.c.l.b16 %v749
  %v843 = vunpack.c.h.b16 %v749
  %v844 = vunpack.c.l.b16 %v750
  %v845 = vunpack.c.h.b16 %v750
  %v846 = vunpack.c.l.b16 %v751
  %v847 = vunpack.c.h.b16 %v751
  %v848 = vpack.c.b16 %v784, %v784
  %v849 = vpack.c.b16 %v785, %v785
  %v850 = vpack.c.b16 %v786, %v786
  %v851 = vpack.c.b16 %v787, %v787
  %v852 = vpack.c.b16 %v788, %v788
  %v853 = vpack.c.b16 %v789, %v789
  %v854 = vpack.c.b16 %v790, %v790
  %v855 = vpack.c.b16 %v791, %v791
  %v856 = vpack.c.b16 %v792, %v792
  %v857 = vpack.c.b16 %v793, %v793
  %v858 = vpack.c.b16 %v794, %v794
  %v859 = vpack.c.b16 %v795, %v795
  %v860 = vpack.c.b16 %v796, %v796
  %v861 = vpack.c.b16 %v797, %v797
  %v862 = vpack.c.b16 %v798, %v798
  %v863 = vpack.c.b16 %v799, %v799
  %v864 = vpack.c.b16 %v800, %v800
  %v865 = vpack.c.b16 %v801, %v801
  %v866 = vpack.c.b16 %v802, %v802
  %v867 = vpack.c.b16 %v803, %v803
  %v868 = vpack.c.b16 %v804, %v804
  %v869 = vpack.c.b16 %v805, %v805
  %v870 = vpack.c.b16 %v806, %v806
  %v871 = vpack.c.b16 %v807, %v807
  %v872 = vpack.c.b16 %v808, %v808
  %v873 = vpack.c.b16 %v809, %v809
  %v874 = vpack.c.b16 %v810, %v810
  %v875 = vpack.c.b16 %v811, %v811
  %v876 = vpack.c.b16 %v812, %v812
  %v877 = vpack.c.b16 %v813, %v813
  %v878 = vpack.c.b16 %v814, %v814
  %v879 = vpack.c.b16 %v815, %v815
  %v880 = vpack.c.b16 %v816, %v816
  %v881 = vpack.c.b16 %v817, %v817
  %v882 = vpack.c.b16 %v818, %v818
  %v883 = vpack.c.b16 %v819, %v819
  %v884 = vpack.c.b16 %v820, %v820
  %v885 = vpack.c.b16 %v821, %v821
  %v886 = vpack.c.b16 %v822, %v822
  %v887 = vpack.c.b16 %v823, %v823
  %v888 = vpack.c.b16 %v824, %v824
  %v889 = vpack.c.b16 %v825, %v825
  %v890 = vpack.c.b16 %v826, %v826
  %v891 = vpack.c.b16 %v827, %v827
  %v892 = vpack.c.b16 %v828, %v828
  %v893 = vpack.c.b16 %v829, %v829
  %v894 = vpack.c.b16 %v830, %v830
  %v895 = vpack.c.b16 %v831, %v831
  %v896 = vpack.c.b16 %v832, %v832
  %v897 = vpack.c.b16 %v833, %v833
  %v898 = vpack.c.b16 %v834, %v834
  %v899 = vpack.c.b16 %v835, %v835
  %v900 = vpack.c.b16 %v836, %v836
  %v901 = vpack.c.b16 %v837, %v837
  %v902 = vpack.c.b16 %v838, %v838
  %v903 = vpack.c.b16 %v839, %v839
  %v904 = vpack.c.b16 %v840, %v840
  %v905 = vpack.c.b16 %v841, %v841
  %v906 = vpack.c.b16 %v842, %v842
  %v907 = vpack.c.b16 %v843, %v843
  %v908 = vpack.c.b16 %v844, %v844
  %v909 = vpack.c.b16 %v845, %v845
  %v910 = vpack.c.b16 %v846, %v846
  %v911 = vpack.c.b16 %v847, %v847
  %976 = vst [vmem:[%s3] sm:$0xf] %v848
  %977 = vst [vmem:[%s3 + $0x4] sm:$0xf] %v849
  %978 = vst [vmem:[%s3 + $0x8] sm:$0xf] %v850
  %979 = vst [vmem:[%s3 + $0xc] sm:$0xf] %v851
  %980 = vst [vmem:[%s3 + $0x10] sm:$0xf] %v852
  %981 = vst [vmem:[%s3 + $0x14] sm:$0xf] %v853
  %982 = vst [vmem:[%s3 + $0x18] sm:$0xf] %v854
  %983 = vst [vmem:[%s3 + $0x1c] sm:$0xf] %v855
  %984 = vst [vmem:[%s3 + $0x20] sm:$0xf] %v856
  %985 = vst [vmem:[%s3 + $0x24] sm:$0xf] %v857
  %986 = vst [vmem:[%s3 + $0x28] sm:$0xf] %v858
  %987 = vst [vmem:[%s3 + $0x2c] sm:$0xf] %v859
  %988 = vst [vmem:[%s3 + $0x30] sm:$0xf] %v860
  %989 = vst [vmem:[%s3 + $0x34] sm:$0xf] %v861
  %990 = vst [vmem:[%s3 + $0x38] sm:$0xf] %v862
  %991 = vst [vmem:[%s3 + $0x3c] sm:$0xf] %v863
  %992 = vst [vmem:[%s3 + $0x40] sm:$0xf] %v864
  %993 = vst [vmem:[%s3 + $0x44] sm:$0xf] %v865
  %994 = vst [vmem:[%s3 + $0x48] sm:$0xf] %v866
  %995 = vst [vmem:[%s3 + $0x4c] sm:$0xf] %v867
  %996 = vst [vmem:[%s3 + $0x50] sm:$0xf] %v868
  %997 = vst [vmem:[%s3 + $0x54] sm:$0xf] %v869
  %998 = vst [vmem:[%s3 + $0x58] sm:$0xf] %v870
  %999 = vst [vmem:[%s3 + $0x5c] sm:$0xf] %v871
  %1000 = vst [vmem:[%s3 + $0x60] sm:$0xf] %v872
  %1001 = vst [vmem:[%s3 + $0x64] sm:$0xf] %v873
  %1002 = vst [vmem:[%s3 + $0x68] sm:$0xf] %v874
  %1003 = vst [vmem:[%s3 + $0x6c] sm:$0xf] %v875
  %1004 = vst [vmem:[%s3 + $0x70] sm:$0xf] %v876
  %1005 = vst [vmem:[%s3 + $0x74] sm:$0xf] %v877
  %1006 = vst [vmem:[%s3 + $0x78] sm:$0xf] %v878
  %1007 = vst [vmem:[%s3 + $0x7c] sm:$0xf] %v879
  %1008 = vst [vmem:[%s3 + $0x80] sm:$0xf] %v880
  %1009 = vst [vmem:[%s3 + $0x84] sm:$0xf] %v881
  %1010 = vst [vmem:[%s3 + $0x88] sm:$0xf] %v882
  %1011 = vst [vmem:[%s3 + $0x8c] sm:$0xf] %v883
  %1012 = vst [vmem:[%s3 + $0x90] sm:$0xf] %v884
  %1013 = vst [vmem:[%s3 + $0x94] sm:$0xf] %v885
  %1014 = vst [vmem:[%s3 + $0x98] sm:$0xf] %v886
  %1015 = vst [vmem:[%s3 + $0x9c] sm:$0xf] %v887
  %1016 = vst [vmem:[%s3 + $0xa0] sm:$0xf] %v888
  %1017 = vst [vmem:[%s3 + $0xa4] sm:$0xf] %v889
  %1018 = vst [vmem:[%s3 + $0xa8] sm:$0xf] %v890
  %1019 = vst [vmem:[%s3 + $0xac] sm:$0xf] %v891
  %1020 = vst [vmem:[%s3 + $0xb0] sm:$0xf] %v892
  %1021 = vst [vmem:[%s3 + $0xb4] sm:$0xf] %v893
  %1022 = vst [vmem:[%s3 + $0xb8] sm:$0xf] %v894
  %1023 = vst [vmem:[%s3 + $0xbc] sm:$0xf] %v895
  %1024 = vst [vmem:[%s3 + $0xc0] sm:$0xf] %v896
  %1025 = vst [vmem:[%s3 + $0xc4] sm:$0xf] %v897
  %1026 = vst [vmem:[%s3 + $0xc8] sm:$0xf] %v898
  %1027 = vst [vmem:[%s3 + $0xcc] sm:$0xf] %v899
  %1028 = vst [vmem:[%s3 + $0xd0] sm:$0xf] %v900
  %1029 = vst [vmem:[%s3 + $0xd4] sm:$0xf] %v901
  %1030 = vst [vmem:[%s3 + $0xd8] sm:$0xf] %v902
  %1031 = vst [vmem:[%s3 + $0xdc] sm:$0xf] %v903
  %1032 = vst [vmem:[%s3 + $0xe0] sm:$0xf] %v904
  %1033 = vst [vmem:[%s3 + $0xe4] sm:$0xf] %v905
  %1034 = vst [vmem:[%s3 + $0xe8] sm:$0xf] %v906
  %1035 = vst [vmem:[%s3 + $0xec] sm:$0xf] %v907
  %1036 = vst [vmem:[%s3 + $0xf0] sm:$0xf] %v908
  %1037 = vst [vmem:[%s3 + $0xf4] sm:$0xf] %v909
  %1038 = vst [vmem:[%s3 + $0xf8] sm:$0xf] %v910
  %1039 = vst [vmem:[%s3 + $0xfc] sm:$0xf] %v911
  // Predicated region
  $region14: #{image_encoder_forward.2} parent=0 // pred_check
    _
  $region15: #{image_encoder_forward.2} parent=0 // pred_check_branch
    %1041 = sbr.rel (0) target = $region17
  $region16: #{image_encoder_forward.2} parent=0 // pred_region
    _
  $region17: #{image_encoder_forward.2} parent=0 // pred_fallthru
    _
  // Predicated region
  $region18: #{image_encoder_forward.2} parent=0 // pred_check
    _
  $region19: #{image_encoder_forward.2} parent=0 // pred_check_branch
    %1043 = sbr.rel (0) target = $region21
  $region20: #{image_encoder_forward.2} parent=0 // pred_region
    _
  $region21: #{image_encoder_forward.2} parent=0 // pred_fallthru
    _

// kernel: image_encoder_forward.3
$region0: #{image_encoder_forward.3}
  #allocation0 [shape = 'u32[]', space=smem, size = 0x4, offset = 0x4, fixed_abs, tag = 'smem constant byte address 0x4 - core index']
  #allocation1 [shape = 'u32[144,128]{1,0:T(1,128)}', space=vmem, size = 0x12000, scoped, tag = 'internal scratch']
  %s0 = inlined_call_operand.vmem [shape: bf16[2,64,288], index: 0, kind: input, shape index: {}]
  %s1 = inlined_call_operand.vmem [shape: bf16[288,128], index: 1, kind: input, shape index: {}]
  %s2 = inlined_call_operand.vmem [shape: f32[1,128], index: 2, kind: input, shape index: {}]
  %s3 = inlined_call_operand.hbm [shape: f32[2,1,128], index: 3, kind: output, shape index: {}]
  %s4 = sld [smem:[#allocation0]]
  $region49: #{image_encoder_forward.3} parent=0
    _
  %s6 = ssub.s32 1, %s4
  %s7 = scalar_select 0, %s6, %s4
  $region1: #{image_encoder_forward.3} parent=0
    #allocation2 [shape = 'u8[1024]{0}', space=vmem, size = 0x400, scoped, tag = 'output window, operand 0']
    #allocation3 [shape = 's32[2]{0}', space=sflag, size = 0x8, scoped, tag = 'scoped memory for image_encoder_forward.3']
    %8 = vsyncpa [#allocation3], 0
    %s9 = scalar_lea.sflag [#allocation3], 1
    %10 = vsyncpa %s9, 0
    loop: start=0, step=1, limit=4
    $region2: #{image_encoder_forward.3} parent=1 // loop_pre_header
      _
    $region3: #{image_encoder_forward.3} parent=1 // loop_header
      %s12 = sphi 0, %s16
      %p13 = scmp.ge.s32.totalorder %s12, 4
      %s19 = sphi 0, %s38
      %s20 = sphi 0, %s34
      %s21 = sphi 0, %s30
      %s22 = sphi 0, %s19
      %s23 = sphi 0, %s20
      %s24 = sphi 0, %s21
      %s25 = sphi 0, %s22
      %s26 = sphi 0, %s23
      %s27 = sphi 0, %s24
      %s43 = sphi 0, %s45
      %s46 = sphi 0, %s43
      %s47 = sphi 0, %s46
      %s63 = sphi 0, %s47
      %s69 = sphi 0, %s71
      %s72 = sphi 0, %s69
      %s73 = sphi 0, %s72
      %s89 = sphi 0, %s73
      %s95 = sphi 0, %s97
      %s98 = sphi 0, %s95
      %s99 = sphi 0, %s98
      %s115 = sphi 0, %s99
      %s123 = sphi 0, %s125
      %s126 = sphi 0, %s123
      %s127 = sphi 0, %s126
      %s143 = sphi 0, %s127
    $region4: #{image_encoder_forward.3} parent=1 // loop_header_branch
      %15 = sbr.rel (%p13) target = $region8
    $region5: #{image_encoder_forward.3} parent=1 // loop_body
      %s17 = ssub.s32 %s12, 1
      %s18 = ssub.s32 %s12, 2
      %s28 = sadd.s32 1, %s21
      %p29 = scmp.ge.s32.totalorder %s28, 1
      %s30 = scalar_select %p29, 0, %s28
      %s31 = sadd.s32 1, %s20
      %s32 = scalar_select %p29, %s31, %s20
      %p33 = scmp.ge.s32.totalorder %s32, 1
      %s34 = scalar_select %p33, 0, %s32
      %s35 = sadd.s32 1, %s19
      %s36 = scalar_select %p33, %s35, %s19
      %p37 = scmp.ge.s32.totalorder %s36, 2
      %s38 = scalar_select %p37, 0, %s36
      %s39 = ssub.s32 %s19, %s38
      %s40 = ssub.s32 %s21, %s30
      %s41 = sor.u32 %s39, %s40
      %p42 = scmp.eq.s32.totalorder %s41, 0
      %s44 = sadd.s32 %s43, 1
      %s45 = scalar_select %p42, %s43, %s44
      %p48 = pneg %p42
      %p49 = scmp.eq.s32.totalorder %s12, 1
      %p50 = por %p48, %p49
      %p51 = scmp.ne.s32.totalorder %s43, %s46
      %p52 = scmp.eq.s32.totalorder %s12, 0
      %p53 = por %p51, %p52
      %p54 = scmp.ne.s32.totalorder %s43, %s46
      %p55 = scmp.eq.s32.totalorder %s17, 1
      %p56 = por %p54, %p55
      %p57 = scmp.ne.s32.totalorder %s46, %s47
      %p58 = scmp.eq.s32.totalorder %s17, 0
      %p59 = por %p57, %p58
      %p60 = scmp.ne.s32.totalorder %s46, %s47
      %p61 = scmp.eq.s32.totalorder %s18, 1
      %p62 = por %p60, %p61
      %p64 = scmp.ne.s32.totalorder %s47, %s63
      %p65 = scmp.eq.s32.totalorder %s18, 0
      %p66 = por %p64, %p65
      %s67 = ssub.s32 %s20, %s34
      %p68 = scmp.eq.s32.totalorder %s67, 0
      %s70 = sadd.s32 %s69, 1
      %s71 = scalar_select %p68, %s69, %s70
      %p74 = pneg %p68
      %p75 = scmp.eq.s32.totalorder %s12, 1
      %p76 = por %p74, %p75
      %p77 = scmp.ne.s32.totalorder %s69, %s72
      %p78 = scmp.eq.s32.totalorder %s12, 0
      %p79 = por %p77, %p78
      %p80 = scmp.ne.s32.totalorder %s69, %s72
      %p81 = scmp.eq.s32.totalorder %s17, 1
      %p82 = por %p80, %p81
      %p83 = scmp.ne.s32.totalorder %s72, %s73
      %p84 = scmp.eq.s32.totalorder %s17, 0
      %p85 = por %p83, %p84
      %p86 = scmp.ne.s32.totalorder %s72, %s73
      %p87 = scmp.eq.s32.totalorder %s18, 1
      %p88 = por %p86, %p87
      %p90 = scmp.ne.s32.totalorder %s73, %s89
      %p91 = scmp.eq.s32.totalorder %s18, 0
      %p92 = por %p90, %p91
      %s93 = ssub.s32 %s20, %s34
      %p94 = scmp.eq.s32.totalorder %s93, 0
      %s96 = sadd.s32 %s95, 1
      %s97 = scalar_select %p94, %s95, %s96
      %p100 = pneg %p94
      %p101 = scmp.eq.s32.totalorder %s12, 1
      %p102 = por %p100, %p101
      %p103 = scmp.ne.s32.totalorder %s95, %s98
      %p104 = scmp.eq.s32.totalorder %s12, 0
      %p105 = por %p103, %p104
      %p106 = scmp.ne.s32.totalorder %s95, %s98
      %p107 = scmp.eq.s32.totalorder %s17, 1
      %p108 = por %p106, %p107
      %p109 = scmp.ne.s32.totalorder %s98, %s99
      %p110 = scmp.eq.s32.totalorder %s17, 0
      %p111 = por %p109, %p110
      %p112 = scmp.ne.s32.totalorder %s98, %s99
      %p113 = scmp.eq.s32.totalorder %s18, 1
      %p114 = por %p112, %p113
      %p116 = scmp.ne.s32.totalorder %s99, %s115
      %p117 = scmp.eq.s32.totalorder %s18, 0
      %p118 = por %p116, %p117
      %s119 = ssub.s32 %s19, %s38
      %s120 = ssub.s32 %s20, %s34
      %s121 = sor.u32 %s119, %s120
      %p122 = scmp.eq.s32.totalorder %s121, 0
      %s124 = sadd.s32 %s123, 1
      %s125 = scalar_select %p122, %s123, %s124
      %p128 = pneg %p122
      %p129 = scmp.eq.s32.totalorder %s12, 1
      %p130 = por %p128, %p129
      %p131 = scmp.ne.s32.totalorder %s123, %s126
      %p132 = scmp.eq.s32.totalorder %s12, 0
      %p133 = por %p131, %p132
      %p134 = scmp.ne.s32.totalorder %s123, %s126
      %p135 = scmp.eq.s32.totalorder %s17, 1
      %p136 = por %p134, %p135
      %p137 = scmp.ne.s32.totalorder %s126, %s127
      %p138 = scmp.eq.s32.totalorder %s17, 0
      %p139 = por %p137, %p138
      %p140 = scmp.ne.s32.totalorder %s126, %s127
      %p141 = scmp.eq.s32.totalorder %s18, 1
      %p142 = por %p140, %p141
      %p144 = scmp.ne.s32.totalorder %s127, %s143
      %p145 = scmp.eq.s32.totalorder %s18, 0
      %p146 = por %p144, %p145
      %p147 = scmp.le.s32.totalorder 1, %s12
      %p148 = scmp.lt.s32.totalorder %s12, 3
      %p149 = pnand %p147, %p148
      %p150 = pneg %p149
      // Predicated region
      $region9: #{image_encoder_forward.3} parent=5 // pred_check
        _
      $region10: #{image_encoder_forward.3} parent=5 // pred_check_branch
        %152 = sbr.rel (%p149) target = $region12
      $region11: #{image_encoder_forward.3} parent=5 // pred_region
        %s153 = ssub.s32 %s12, 1
        // Predicated region
        $region13: #{image_encoder_forward.3} parent=11 // pred_check
          %p154 = pneg %p85
        $region14: #{image_encoder_forward.3} parent=11 // pred_check_branch
          %156 = sbr.rel (%p154) target = $region16
        $region15: #{image_encoder_forward.3} parent=11 // pred_region
          %p157 = scmp.lt.s32.totalorder %s23, 0
          %s158 = scalar_select %p157, %s23, 0
          %s159 = smul.addr %s158, 4
          %s160 = scalar_lea.vmem %s1, %s159
        $region16: #{image_encoder_forward.3} parent=11 // pred_fallthru
          _
        // Predicated region
        $region17: #{image_encoder_forward.3} parent=11 // pred_check
          %p161 = pneg %p111
        $region18: #{image_encoder_forward.3} parent=11 // pred_check_branch
          %163 = sbr.rel (%p161) target = $region20
        $region19: #{image_encoder_forward.3} parent=11 // pred_region
          %p164 = scmp.lt.s32.totalorder %s23, 0
          %s165 = scalar_select %p164, %s23, 0
          %s166 = scalar_lea.vmem %s2, %s165
        $region20: #{image_encoder_forward.3} parent=11 // pred_fallthru
          _
      $region12: #{image_encoder_forward.3} parent=5 // pred_fallthru
        _
      %p167 = scmp.lt.s32.totalorder %s12, 2
      // Predicated region
      $region21: #{image_encoder_forward.3} parent=5 // pred_check
        %p168 = pneg %p167
      $region22: #{image_encoder_forward.3} parent=5 // pred_check_branch
        %170 = sbr.rel (%p168) target = $region24
      $region23: #{image_encoder_forward.3} parent=5 // pred_region
        // Predicated region
        $region25: #{image_encoder_forward.3} parent=23 // pred_check
          %p171 = pneg %p53
        $region26: #{image_encoder_forward.3} parent=23 // pred_check_branch
          %173 = sbr.rel (%p171) target = $region28
        $region27: #{image_encoder_forward.3} parent=23 // pred_region
          %s174 = smul.u32 8, %s21
          %p175 = scmp.lt.s32.totalorder %s19, 1
          %s176 = scalar_select %p175, %s19, 1
          %p177 = scmp.lt.s32.totalorder %s174, 7
          %s178 = scalar_select %p177, %s174, 7
          %s179 = smul.addr %s178, 3
          %s180 = smul.addr %s176, 24
          %s181 = sadd.s32 %s179, %s180
          %s182 = smul.addr %s181, 4
          %s183 = scalar_lea.vmem %s0, %s182
          %s184 = smul.u32 8, %s21
        $region28: #{image_encoder_forward.3} parent=23 // pred_fallthru
          _
      $region24: #{image_encoder_forward.3} parent=5 // pred_fallthru
        _
      %p185 = scmp.le.s32.totalorder 1, %s12
      %p186 = scmp.lt.s32.totalorder %s12, 3
      %p187 = pnand %p185, %p186
      %p188 = pneg %p187
      // Predicated region
      $region29: #{image_encoder_forward.3} parent=5 // pred_check
        _
      $region30: #{image_encoder_forward.3} parent=5 // pred_check_branch
        %190 = sbr.rel (%p187) target = $region32
      $region31: #{image_encoder_forward.3} parent=5 // pred_region
        %s191 = ssub.s32 %s12, 1
        %s192 = smul.u32 8, %s24
        %p193 = scmp.lt.s32.totalorder %s22, 1
        %s194 = scalar_select %p193, %s22, 1
        %p195 = scmp.lt.s32.totalorder %s192, 7
        %s196 = scalar_select %p195, %s192, 7
        %s197 = smul.addr %s196, 3
        %s198 = smul.addr %s194, 24
        %s199 = sadd.s32 %s197, %s198
        %s200 = smul.addr %s199, 4
        %s201 = scalar_lea.vmem %s0, %s200
        %p202 = pneg %p59
        %p203 = pneg %p56
        %p204 = scmp.lt.s32.totalorder %s23, 0
        %s205 = scalar_select %p204, %s23, 0
        %s206 = smul.addr %s205, 4
        %s207 = scalar_lea.vmem %s1, %s206
        %p208 = pneg %p85
        %p209 = pneg %p82
        %p210 = scmp.lt.s32.totalorder %s23, 0
        %s211 = scalar_select %p210, %s23, 0
        %s212 = scalar_lea.vmem %s2, %s211
        %p213 = pneg %p111
        %p214 = pneg %p108
        %p215 = pneg %p139
        %p216 = pneg %p136
        %s217 = sand.u32 %s126, 1
        %s218 = scalar_lea.sflag [#allocation3], %s217
        %s219 = sand.u32 %s126, 1
        %s220 = scalar_lea.vmem [#allocation2], %s219
        %s221 = smul.u32 8, %s24
        %p222 = scmp.lt.s32.totalorder %s22, 1
        %s223 = scalar_select %p222, %s22, 1
        %p224 = scmp.lt.s32.totalorder %s221, 7
        %s225 = scalar_select %p224, %s221, 7
        %s226 = smul.addr %s225, 3
        %s227 = smul.addr %s223, 24
        %s228 = sadd.s32 %s226, %s227
        %s229 = smul.addr %s228, 4
        %s230 = scalar_lea.vmem %s0, %s229
        %s231 = smul.u32 8, %s24
        %p232 = scmp.lt.s32.totalorder %s23, 0
        %s233 = scalar_select %p232, %s23, 0
        %s234 = smul.addr %s233, 4
        %s235 = scalar_lea.vmem %s1, %s234
        %p236 = scmp.lt.s32.totalorder %s23, 0
        %s237 = scalar_select %p236, %s23, 0
        %s238 = scalar_lea.vmem %s2, %s237
        %p240 = scmp.eq.s32.totalorder %s24, 0
        // Predicated region
        $region33: #{image_encoder_forward.3} parent=31 // pred_check
          %p241 = pneg %p240
        $region34: #{image_encoder_forward.3} parent=31 // pred_check_branch
          %243 = sbr.rel (%p241) target = $region36
        $region35: #{image_encoder_forward.3} parent=31 // pred_region
          %244 = vst [vmem:[%s220] sm:$0x1] 0.0
        $region36: #{image_encoder_forward.3} parent=31 // pred_fallthru
          _
        %v245 = vld [vmem:[%s230] sm:$0xff]
        %v246 = vld [vmem:[%s230 + $0x8] sm:$0xf]
        %v247 = vld [vmem:[%s230 + $0xc] sm:$0xff]
        %v248 = vld [vmem:[%s230 + $0x14] sm:$0xf]
        %v249 = vld [vmem:[%s230 + $0x18] sm:$0xff]
        %v250 = vld [vmem:[%s230 + $0x20] sm:$0xf]
        %v251 = vld [vmem:[%s230 + $0x24] sm:$0xff]
        %v252 = vld [vmem:[%s230 + $0x2c] sm:$0xf]
        %v253 = vld [vmem:[%s230 + $0x30] sm:$0xff]
        %v254 = vld [vmem:[%s230 + $0x38] sm:$0xf]
        %v255 = vld [vmem:[%s230 + $0x3c] sm:$0xff]
        %v256 = vld [vmem:[%s230 + $0x44] sm:$0xf]
        %v257 = vld [vmem:[%s230 + $0x48] sm:$0xff]
        %v258 = vld [vmem:[%s230 + $0x50] sm:$0xf]
        %v259 = vld [vmem:[%s230 + $0x54] sm:$0xff]
        %v260 = vld [vmem:[%s230 + $0x5c] sm:$0xf]
        %v261 = vld [vmem:[%s235] sm:$0xf]
        %v262 = vld [vmem:[%s235 + $0x4] sm:$0xf]
        %v263 = vld [vmem:[%s235 + $0x8] sm:$0xf]
        %v264 = vld [vmem:[%s235 + $0xc] sm:$0xf]
        %v265 = vld [vmem:[%s235 + $0x10] sm:$0xf]
        %v266 = vld [vmem:[%s235 + $0x14] sm:$0xf]
        %v267 = vld [vmem:[%s235 + $0x18] sm:$0xf]
        %v268 = vld [vmem:[%s235 + $0x1c] sm:$0xf]
        %v269 = vld [vmem:[%s235 + $0x20] sm:$0xf]
        %v270 = vld [vmem:[%s235 + $0x24] sm:$0xf]
        %v271 = vld [vmem:[%s235 + $0x28] sm:$0xf]
        %v272 = vld [vmem:[%s235 + $0x2c] sm:$0xf]
        %v273 = vld [vmem:[%s235 + $0x30] sm:$0xf]
        %v274 = vld [vmem:[%s235 + $0x34] sm:$0xf]
        %v275 = vld [vmem:[%s235 + $0x38] sm:$0xf]
        %v276 = vld [vmem:[%s235 + $0x3c] sm:$0xf]
        %v277 = vld [vmem:[%s235 + $0x40] sm:$0xf]
        %v278 = vld [vmem:[%s235 + $0x44] sm:$0xf]
        %v279 = vld [vmem:[%s235 + $0x48] sm:$0xf]
        %v280 = vld [vmem:[%s235 + $0x4c] sm:$0xf]
        %v281 = vld [vmem:[%s235 + $0x50] sm:$0xf]
        %v282 = vld [vmem:[%s235 + $0x54] sm:$0xf]
        %v283 = vld [vmem:[%s235 + $0x58] sm:$0xf]
        %v284 = vld [vmem:[%s235 + $0x5c] sm:$0xf]
        %v285 = vld [vmem:[%s235 + $0x60] sm:$0xf]
        %v286 = vld [vmem:[%s235 + $0x64] sm:$0xf]
        %v287 = vld [vmem:[%s235 + $0x68] sm:$0xf]
        %v288 = vld [vmem:[%s235 + $0x6c] sm:$0xf]
        %v289 = vld [vmem:[%s235 + $0x70] sm:$0xf]
        %v290 = vld [vmem:[%s235 + $0x74] sm:$0xf]
        %v291 = vld [vmem:[%s235 + $0x78] sm:$0xf]
        %v292 = vld [vmem:[%s235 + $0x7c] sm:$0xf]
        %v293 = vld [vmem:[%s235 + $0x80] sm:$0xf]
        %v294 = vld [vmem:[%s235 + $0x84] sm:$0xf]
        %v295 = vld [vmem:[%s235 + $0x88] sm:$0xf]
        %v296 = vld [vmem:[%s235 + $0x8c] sm:$0xf]
        %v297 = vld [vmem:[%s238] sm:$0x1]
        %v299 = vlaneseq
        %v300 = vshrl.u32 %v299, 7
        %v301 = vsub.s32 0, %v300
        %v302 = vrot.slane %v297, %v301
        %v320 = vunpack.c.l.b16 %v245
        %v321 = vunpack.c.h.b16 %v245
        %v322 = vunpack.c.l.b16 %v246
        %v323 = vunpack.c.l.b16 %v247
        %v324 = vunpack.c.h.b16 %v247
        %v325 = vunpack.c.l.b16 %v248
        %v326 = vunpack.c.l.b16 %v249
        %v327 = vunpack.c.h.b16 %v249
        %v328 = vunpack.c.l.b16 %v250
        %v329 = vunpack.c.l.b16 %v251
        %v330 = vunpack.c.h.b16 %v251
        %v331 = vunpack.c.l.b16 %v252
        %v332 = vunpack.c.l.b16 %v253
        %v333 = vunpack.c.h.b16 %v253
        %v334 = vunpack.c.l.b16 %v254
        %v335 = vunpack.c.l.b16 %v255
        %v336 = vunpack.c.h.b16 %v255
        %v337 = vunpack.c.l.b16 %v256
        %v338 = vunpack.c.l.b16 %v257
        %v339 = vunpack.c.h.b16 %v257
        %v340 = vunpack.c.l.b16 %v258
        %v341 = vunpack.c.l.b16 %v259
        %v342 = vunpack.c.h.b16 %v259
        %v343 = vunpack.c.l.b16 %v260
        %v344 = vpack.c.b16 %v323, %v320
        %v345 = vpack.c.b16 %v324, %v321
        %v346 = vpack.c.b16 %v325, %v322
        %v347 = vpack.c.b16 %v329, %v326
        %v348 = vpack.c.b16 %v330, %v327
        %v349 = vpack.c.b16 %v331, %v328
        %v350 = vpack.c.b16 %v335, %v332
        %v351 = vpack.c.b16 %v336, %v333
        %v352 = vpack.c.b16 %v337, %v334
        %v353 = vpack.c.b16 %v341, %v338
        %v354 = vpack.c.b16 %v342, %v339
        %v355 = vpack.c.b16 %v343, %v340
        %v400 = vunpack.c.l.b16 %v261
        %v401 = vunpack.c.l.b16 %v262
        %v402 = vunpack.c.l.b16 %v263
        %v403 = vunpack.c.l.b16 %v264
        %v404 = vunpack.c.l.b16 %v265
        %v405 = vunpack.c.l.b16 %v266
        %v406 = vunpack.c.l.b16 %v267
        %v407 = vunpack.c.l.b16 %v268
        %v408 = vunpack.c.l.b16 %v269
        %v409 = vunpack.c.l.b16 %v270
        %v410 = vunpack.c.l.b16 %v271
        %v411 = vunpack.c.l.b16 %v272
        %v412 = vunpack.c.l.b16 %v273
        %v413 = vunpack.c.l.b16 %v274
        %v414 = vunpack.c.l.b16 %v275
        %v415 = vunpack.c.l.b16 %v276
        %v416 = vunpack.c.l.b16 %v277
        %v417 = vunpack.c.l.b16 %v278
        %v418 = vunpack.c.l.b16 %v279
        %v419 = vunpack.c.l.b16 %v280
        %v420 = vunpack.c.l.b16 %v281
        %v421 = vunpack.c.l.b16 %v282
        %v422 = vunpack.c.l.b16 %v283
        %v423 = vunpack.c.l.b16 %v284
        %v424 = vunpack.c.l.b16 %v285
        %v425 = vunpack.c.l.b16 %v286
        %v426 = vunpack.c.l.b16 %v287
        %v427 = vunpack.c.l.b16 %v288
        %v428 = vunpack.c.l.b16 %v289
        %v429 = vunpack.c.l.b16 %v290
        %v430 = vunpack.c.l.b16 %v291
        %v431 = vunpack.c.l.b16 %v292
        %v432 = vunpack.c.l.b16 %v293
        %v433 = vunpack.c.l.b16 %v294
        %v434 = vunpack.c.l.b16 %v295
        %v435 = vunpack.c.l.b16 %v296
        %v436 = vpack.c.b16 %v401, %v400
        %v437 = vpack.c.b16 %v403, %v402
        %v438 = vpack.c.b16 %v405, %v404
        %v439 = vpack.c.b16 %v407, %v406
        %v440 = vpack.c.b16 %v409, %v408
        %v441 = vpack.c.b16 %v411, %v410
        %v442 = vpack.c.b16 %v413, %v412
        %v443 = vpack.c.b16 %v415, %v414
        %v444 = vpack.c.b16 %v417, %v416
        %v445 = vpack.c.b16 %v419, %v418
        %v446 = vpack.c.b16 %v421, %v420
        %v447 = vpack.c.b16 %v423, %v422
        %v448 = vpack.c.b16 %v425, %v424
        %v449 = vpack.c.b16 %v427, %v426
        %v450 = vpack.c.b16 %v429, %v428
        %v451 = vpack.c.b16 %v431, %v430
        %v452 = vpack.c.b16 %v433, %v432
        %v453 = vpack.c.b16 %v435, %v434
        %vm472 = vcmask 261120
        %v474 = vsel %vm472, %v346, 0
        %v477 = vsel %vm472, %v349, 0
        %v480 = vsel %vm472, %v352, 0
        %v483 = vsel %vm472, %v355, 0
        %485 = vmatprep.subr.bf16.mxu0 0
        %486 = vmatpush1.bf16.msra.mxu0 %v436
        %487 = vmatprep.subr.bf16.mxu0 0
        %488 = vmatpush1.bf16.msra.mxu0 %v437
        %489 = vmatprep.subr.bf16.mxu0 0
        %490 = vmatpush1.bf16.msra.mxu0 %v438
        %491 = vmatprep.subr.bf16.mxu0 0
        %492 = vmatpush1.bf16.msra.mxu0 %v439
        %493 = vmatprep.subr.bf16.mxu0 0
        %494 = vmatpush1.bf16.msra.mxu0 %v440
        %495 = vmatprep.subr.bf16.mxu0 0
        %496 = vmatpush1.bf16.msra.mxu0 %v441
        %497 = vmatprep.subr.bf16.mxu0 0
        %498 = vmatpush1.bf16.msra.mxu0 %v442
        %499 = vmatprep.subr.bf16.mxu0 0
        %500 = vmatpush1.bf16.msra.mxu0 %v443
        %501 = vmatprep.subr.bf16.mxu0 0
        %502 = vmatpush1.bf16.msra.mxu0 %v444
        %503 = vmatprep.subr.bf16.mxu0 0
        %504 = vmatpush1.bf16.msra.mxu0 %v445
        %505 = vmatprep.subr.bf16.mxu0 0
        %506 = vmatpush1.bf16.msra.mxu0 %v446
        %507 = vmatprep.subr.bf16.mxu0 0
        %508 = vmatpush1.bf16.msra.mxu0 %v447
        %509 = vmatprep.subr.bf16.mxu0 0
        %510 = vmatpush1.bf16.msra.mxu0 %v448
        %511 = vmatprep.subr.bf16.mxu0 0
        %512 = vmatpush1.bf16.msra.mxu0 %v449
        %513 = vmatprep.subr.bf16.mxu0 0
        %514 = vmatpush1.bf16.msra.mxu0 %v450
        %515 = vmatprep.subr.bf16.mxu0 0
        %516 = vmatpush1.bf16.msra.mxu0 %v451
        %517 = vmatprep.mubr.bf16.mxu0 %v345
        %518 = vmatmul.mubr.bf16.gmra.mrb[0].mxu0 %v344
        %v519 = vpop.f32.mrb[0].mxu0
        %v520 = vadd.f32 %v302, %v519
        %v521 = vpop.f32.mrb[0].mxu0
        %v522 = vpop.f32.mrb[0].mxu0
        %v523 = vadd.f32 %v302, %v522
        %v524 = vpop.f32.mrb[0].mxu0
        %525 = vmatprep.mubr.bf16.mxu0 %v348
        %526 = vmatmul.mubr.bf16.gmra.mrb[0].mxu0 %v347
        %v527 = vpop.f32.mrb[0].mxu0
        %v528 = vadd.f32 %v302, %v527
        %v529 = vpop.f32.mrb[0].mxu0
        %v530 = vpop.f32.mrb[0].mxu0
        %v531 = vadd.f32 %v302, %v530
        %v532 = vpop.f32.mrb[0].mxu0
        %533 = vmatprep.mubr.bf16.mxu0 %v351
        %534 = vmatmul.mubr.bf16.gmra.mrb[0].mxu0 %v350
        %v535 = vpop.f32.mrb[0].mxu0
        %v536 = vadd.f32 %v302, %v535
        %v537 = vpop.f32.mrb[0].mxu0
        %v538 = vpop.f32.mrb[0].mxu0
        %v539 = vadd.f32 %v302, %v538
        %v540 = vpop.f32.mrb[0].mxu0
        %541 = vmatprep.mubr.bf16.mxu0 %v354
        %542 = vmatmul.mubr.bf16.gmra.mrb[0].mxu0 %v353
        %v543 = vpop.f32.mrb[0].mxu0
        %v544 = vadd.f32 %v302, %v543
        %v545 = vpop.f32.mrb[0].mxu0
        %v546 = vpop.f32.mrb[0].mxu0
        %v547 = vadd.f32 %v302, %v546
        %v548 = vpop.f32.mrb[0].mxu0
        %549 = vdwg.mxu0
        %550 = vmatprep.subr.bf16.mxu0 0
        %551 = vmatpush1.bf16.msra.mxu0 %v452
        %552 = vmatprep.subr.bf16.mxu0 0
        %553 = vmatpush1.bf16.msra.mxu0 %v453
        %554 = vmatprep.subr.bf16.mxu0 0
        %555 = vmatpush1.bf16.msra.mxu0 0
        %556 = vmatprep.subr.bf16.mxu0 0
        %557 = vmatpush1.bf16.msra.mxu0 0
        %558 = vmatprep.subr.bf16.mxu0 0
        %559 = vmatpush1.bf16.msra.mxu0 0
        %560 = vmatprep.subr.bf16.mxu0 0
        %561 = vmatpush1.bf16.msra.mxu0 0
        %562 = vmatprep.subr.bf16.mxu0 0
        %563 = vmatpush1.bf16.msra.mxu0 0
        %564 = vmatprep.subr.bf16.mxu0 0
        %565 = vmatpush1.bf16.msra.mxu0 0
        %566 = vmatprep.subr.bf16.mxu0 0
        %567 = vmatpush1.bf16.msra.mxu0 0
        %568 = vmatprep.subr.bf16.mxu0 0
        %569 = vmatpush1.bf16.msra.mxu0 0
        %570 = vmatprep.subr.bf16.mxu0 0
        %571 = vmatpush1.bf16.msra.mxu0 0
        %572 = vmatprep.subr.bf16.mxu0 0
        %573 = vmatpush1.bf16.msra.mxu0 0
        %574 = vmatprep.subr.bf16.mxu0 0
        %575 = vmatpush1.bf16.msra.mxu0 0
        %576 = vmatprep.subr.bf16.mxu0 0
        %577 = vmatpush1.bf16.msra.mxu0 0
        %578 = vmatprep.subr.bf16.mxu0 0
        %579 = vmatpush1.bf16.msra.mxu0 0
        %580 = vmatprep.subr.bf16.mxu0 0
        %581 = vmatpush1.bf16.msra.mxu0 0
        %582 = vmatprep.mubr.bf16.mxu0 0
        %583 = vmatmul.mubr.bf16.gmra.mrb[0].mxu0 %v474
        %v584 = vpop.f32.mrb[0].mxu0
        %v585 = vadd.f32 %v520, %v584
        %v586 = vpop.f32.mrb[0].mxu0
        %v587 = vpop.f32.mrb[0].mxu0
        %v588 = vadd.f32 %v523, %v587
        %v589 = vpop.f32.mrb[0].mxu0
        %590 = vmatprep.mubr.bf16.mxu0 0
        %591 = vmatmul.mubr.bf16.gmra.mrb[0].mxu0 %v477
        %v592 = vpop.f32.mrb[0].mxu0
        %v593 = vadd.f32 %v528, %v592
        %v594 = vpop.f32.mrb[0].mxu0
        %v595 = vpop.f32.mrb[0].mxu0
        %v596 = vadd.f32 %v531, %v595
        %v597 = vpop.f32.mrb[0].mxu0
        %598 = vmatprep.mubr.bf16.mxu0 0
        %599 = vmatmul.mubr.bf16.gmra.mrb[0].mxu0 %v480
        %v600 = vpop.f32.mrb[0].mxu0
        %v601 = vadd.f32 %v536, %v600
        %v602 = vpop.f32.mrb[0].mxu0
        %v603 = vpop.f32.mrb[0].mxu0
        %v604 = vadd.f32 %v539, %v603
        %v605 = vpop.f32.mrb[0].mxu0
        %606 = vmatprep.mubr.bf16.mxu0 0
        %607 = vmatmul.mubr.bf16.gmra.mrb[0].mxu0 %v483
        %v608 = vpop.f32.mrb[0].mxu0
        %v609 = vadd.f32 %v544, %v608
        %v610 = vpop.f32.mrb[0].mxu0
        %v611 = vpop.f32.mrb[0].mxu0
        %v612 = vadd.f32 %v547, %v611
        %v613 = vpop.f32.mrb[0].mxu0
        %614 = vdwg.mxu0
        %v615 = vmax.f32 %v585, 0.0
        %v616 = vmax.f32 %v588, 0.0
        %v617 = vmax.f32 %v593, 0.0
        %v618 = vmax.f32 %v596, 0.0
        %v619 = vmax.f32 %v601, 0.0
        %v620 = vmax.f32 %v604, 0.0
        %v621 = vmax.f32 %v609, 0.0
        %v622 = vmax.f32 %v612, 0.0
        %v623 = vadd.f32 %v615, %v616
        %v624 = vadd.f32 %v623, %v617
        %v625 = vadd.f32 %v624, %v618
        %v626 = vadd.f32 %v625, %v619
        %v627 = vadd.f32 %v626, %v620
        %v628 = vadd.f32 %v627, %v621
        %v629 = vadd.f32 %v628, %v622
        %v630 = vrot.slane %v629, 4
        %v631 = vadd.f32 %v629, %v630
        %v632 = vrot.slane %v631, 2
        %v633 = vadd.f32 %v631, %v632
        %v634 = vrot.slane %v633, 1
        %v635 = vadd.f32 %v633, %v634
        %v636 = vmul.f32 %v635, 0.015625
        %v637 = vld [vmem:[%s220] sm:$0x1]
        %v638 = vadd.f32 %v637, %v636
        %639 = vst [vmem:[%s220] sm:$0x1] %v638
        %s640 = sand.u32 %s126, 1
        %s641 = scalar_lea.sflag [#allocation3], %s640
        %s642 = sand.u32 %s126, 1
        %s643 = scalar_lea.vmem [#allocation2], %s642
        // Predicated region
        $region37: #{image_encoder_forward.3} parent=31 // pred_check
          %p644 = pneg %p136
        $region38: #{image_encoder_forward.3} parent=31 // pred_check_branch
          %646 = sbr.rel (%p644) target = $region40
        $region39: #{image_encoder_forward.3} parent=31 // pred_region
          %s648 = ssub.s32 16, 16
          %649 = vsyncadd %s641, %s648
          %s650 = sadd.s32 %s23, %s22
          %s651 = smul.addr %s650, 16
          %s652 = scalar_lea.hbm %s3, %s651
          %s654 = sshll.u32 %s643, 4
          %s655 = int_to_ptr.vmem [resolvable:$true] %s654
          %657 = dma.vmem_to_hbm [thread:$0]  %s655, 16, %s652, %s641
        $region40: #{image_encoder_forward.3} parent=31 // pred_fallthru
          _
      $region32: #{image_encoder_forward.3} parent=5 // pred_fallthru
        _
      %p658 = scmp.le.s32.totalorder 2, %s12
      // Predicated region
      $region41: #{image_encoder_forward.3} parent=5 // pred_check
        %p659 = pneg %p658
      $region42: #{image_encoder_forward.3} parent=5 // pred_check_branch
        %661 = sbr.rel (%p659) target = $region44
      $region43: #{image_encoder_forward.3} parent=5 // pred_region
        %s662 = ssub.s32 %s12, 2
        // Predicated region
        $region45: #{image_encoder_forward.3} parent=43 // pred_check
          %p663 = pneg %p142
        $region46: #{image_encoder_forward.3} parent=43 // pred_check_branch
          %665 = sbr.rel (%p663) target = $region48
        $region47: #{image_encoder_forward.3} parent=43 // pred_region
          %s666 = sand.u32 %s127, 1
          %s667 = scalar_lea.sflag [#allocation3], %s666
          %s668 = sand.u32 %s127, 1
          %s669 = scalar_lea.vmem [#allocation2], %s668
          %670 = dma.done %s667, 16
        $region48: #{image_encoder_forward.3} parent=43 // pred_fallthru
          _
      $region44: #{image_encoder_forward.3} parent=5 // pred_fallthru
        _
    $region6: #{image_encoder_forward.3} parent=1 // loop_footer
      %s16 = sadd.s32 1, %s12
    $region7: #{image_encoder_forward.3} parent=1 // loop_footer_branch
      %11 = sbr.rel target = $region3
    $region8: #{image_encoder_forward.3} parent=1 // loop_exit
      _
    %671 = vsyncpa [#allocation3], 1
    %s672 = scalar_lea.sflag [#allocation3], 1
    %673 = vsyncpa %s672, 1

</llo_original>
